<compile_context>
chip_gen: v7x
topology: tpu7x:2x2x1
jax: 0.10.0
libtpu: 0.0.40
codegen_flags: <defaults>
</compile_context>

<pallas_src>
import jax
import jax.numpy as jnp
from jax.experimental import pallas as pl
from jax.experimental.pallas import tpu as pltpu

N_FEAT = 32
Z_DIM = 10
HIDDEN = 32
BATCH = 512          # exercises a 4-step batch grid at TILE_B=128
TILE_B = 128         # 128 rows fills the 128-deep MXU on v5e; fine on v6e/v7x

LANE = 128           # TPU lane width; every layer dim is padded to this
K_PAD = 128          # max fan-in across layers (hidden*4 = 128)

# Column offsets of each layer inside the packed weight/bias slabs.
COL_E1 = 0            # encoder.0 : n_feat -> 4h (=128)
COL_E2 = 1 * LANE     # encoder.2 : 4h     -> 2h
COL_E3 = 2 * LANE     # encoder.4 : 2h     -> h
COL_HEAD = 3 * LANE   # fused fc_mu | fc_var : h -> 2*128 (mu @ [0:10], var @ [128:138])
COL_MU = COL_HEAD
COL_VAR = COL_HEAD + LANE
COL_D1 = 5 * LANE     # decoder.0 : z_dim -> h
COL_D2 = 6 * LANE     # decoder.2 : h     -> 2h
COL_D3 = 7 * LANE     # decoder.4 : 2h    -> 4h
COL_D4 = 8 * LANE     # decoder.6 : 4h    -> n_feat
W_TOTAL = 9 * LANE    # 1152


def _vae_kernel(x_ref, eps_ref, w_ref, b_ref, recon_ref, muvar_ref):
    def leaky(h):
        # nn.LeakyReLU default negative_slope = 0.01
        return jnp.where(h > 0, h, 0.01 * h)

    def lin(h, col, width):
        w = w_ref[:, col:col + width]      # static slice into the resident weight slab
        b = b_ref[:, col:col + width]      # [1, width] broadcasts over the batch tile
        return jnp.dot(h, w, preferred_element_type=jnp.float32) + b

    x = x_ref[...]                         # [TILE_B, 128] (n_feat zero-padded)

    # Encoder: n_feat -> 4h -> 2h -> h, LeakyReLU after each (all lane-padded to 128)
    h = leaky(lin(x, COL_E1, LANE))
    h = leaky(lin(h, COL_E2, LANE))
    h = leaky(lin(h, COL_E3, LANE))

    # Fused latent heads: one [TILE_B,128] @ [128,256] matmul; split at the
    # 128-lane boundary so mu and logvar both stay full, unmasked vregs.
    muvar = lin(h, COL_HEAD, 2 * LANE)
    mu = muvar[:, :LANE]
    logvar = muvar[:, LANE:2 * LANE]

    # Reparameterization: z = eps*exp(0.5*logvar)+mu.  In padded lanes eps=0,
    # mu=0, logvar=0 -> z=0 (and the decoder's padded weight rows are zero anyway).
    z = eps_ref[...] * jnp.exp(0.5 * logvar) + mu

    # Decoder: z -> h -> 2h -> 4h -> n_feat (no activation on the last layer)
    d = leaky(lin(z, COL_D1, LANE))
    d = leaky(lin(d, COL_D2, LANE))
    d = leaky(lin(d, COL_D3, LANE))
    recon_ref[...] = lin(d, COL_D4, LANE)
    muvar_ref[...] = muvar


def make_params(key, n_feat=N_FEAT, z_dim=Z_DIM, hidden=HIDDEN):
    """Deterministic synthetic params.  Weights stored [in, out] (transposed vs
    torch's [out, in]); biases stored [1, out]."""
    dims = [
        (n_feat, hidden * 4),      # encoder.0
        (hidden * 4, hidden * 2),  # encoder.2
        (hidden * 2, hidden),      # encoder.4
        (hidden, z_dim),           # fc_mu
        (hidden, z_dim),           # fc_var
        (z_dim, hidden),           # decoder.0
        (hidden, hidden * 2),      # decoder.2
        (hidden * 2, hidden * 4),  # decoder.4
        (hidden * 4, n_feat),      # decoder.6
    ]
    params = []
    for i, (fan_in, fan_out) in enumerate(dims):
        kw, kb = jax.random.split(jax.random.fold_in(key, i))
        scale = 1.0 / jnp.sqrt(jnp.float32(fan_in))
        w = jax.random.uniform(kw, (fan_in, fan_out), jnp.float32, -scale, scale)
        b = jax.random.uniform(kb, (1, fan_out), jnp.float32, -scale, scale)
        params.append((w, b))
    return params


def pack_params(params):
    """Pack all weights/biases into one lane-dense [K_PAD, W_TOTAL] weight slab and
    one [1, W_TOTAL] bias slab (zero-padded to full 128-lane chunks)."""
    (ew1, eb1), (ew2, eb2), (ew3, eb3), (wmu, bmu), (wvar, bvar), \
        (dw1, db1), (dw2, db2), (dw3, db3), (dw4, db4) = params

    w_slab = jnp.zeros((K_PAD, W_TOTAL), jnp.float32)
    b_slab = jnp.zeros((1, W_TOTAL), jnp.float32)
    layout = [
        (ew1, eb1, COL_E1), (ew2, eb2, COL_E2), (ew3, eb3, COL_E3),
        (wmu, bmu, COL_MU), (wvar, bvar, COL_VAR),
        (dw1, db1, COL_D1), (dw2, db2, COL_D2), (dw3, db3, COL_D3),
        (dw4, db4, COL_D4),
    ]
    for w, b, col in layout:
        fi, fo = w.shape
        w_slab = w_slab.at[:fi, col:col + fo].set(w)
        b_slab = b_slab.at[:, col:col + fo].set(b)
    return w_slab, b_slab


def vae_forward(x, eps, params, *, tile_b=TILE_B):
    B, n_feat = x.shape
    assert n_feat == N_FEAT and eps.shape == (B, Z_DIM)
    w_slab, b_slab = pack_params(params)

    # Pad batch to a multiple of the tile and pad inputs to the 128-lane width.
    b_pad = ((B + tile_b - 1) // tile_b) * tile_b
    x_pad = jnp.zeros((b_pad, LANE), jnp.float32).at[:B, :n_feat].set(x)
    eps_pad = jnp.zeros((b_pad, LANE), jnp.float32).at[:B, :Z_DIM].set(eps)

    recon_pad, muvar = pl.pallas_call(
        _vae_kernel,
        out_shape=(
            jax.ShapeDtypeStruct((b_pad, LANE), jnp.float32),       # recon (lane-padded)
            jax.ShapeDtypeStruct((b_pad, 2 * LANE), jnp.float32),   # mu | logvar slab
        ),
        grid=(b_pad // tile_b,),
        in_specs=[
            pl.BlockSpec((tile_b, LANE), lambda i: (i, 0)),         # x tile
            pl.BlockSpec((tile_b, LANE), lambda i: (i, 0)),         # eps tile
            pl.BlockSpec((K_PAD, W_TOTAL), lambda i: (0, 0)),       # weights: VMEM-resident
            pl.BlockSpec((1, W_TOTAL), lambda i: (0, 0)),           # biases:  VMEM-resident
        ],
        out_specs=(
            pl.BlockSpec((tile_b, LANE), lambda i: (i, 0)),
            pl.BlockSpec((tile_b, 2 * LANE), lambda i: (i, 0)),
        ),
        compiler_params=pltpu.CompilerParams(
            dimension_semantics=("parallel",)),                     # megacore sharding on v7x
    )(x_pad, eps_pad, w_slab, b_slab)

    recon = recon_pad[:B, :n_feat]
    mu = muvar[:B, :Z_DIM]
    logvar = muvar[:B, LANE:LANE + Z_DIM]
    # Matches PyTorch forward() return: [decode(z), input, mu, log_var]
    return recon, x, mu, logvar


def vae_forward_ref(x, eps, params):
    """Pure-JAX reference for correctness check."""
    def leaky(h):
        return jnp.where(h > 0, h, 0.01 * h)
    (ew1, eb1), (ew2, eb2), (ew3, eb3), (wmu, bmu), (wvar, bvar), \
        (dw1, db1), (dw2, db2), (dw3, db3), (dw4, db4) = params
    h = leaky(x @ ew1 + eb1)
    h = leaky(h @ ew2 + eb2)
    h = leaky(h @ ew3 + eb3)
    mu = h @ wmu + bmu
    logvar = h @ wvar + bvar
    z = eps * jnp.exp(0.5 * logvar) + mu
    d = leaky(z @ dw1 + db1)
    d = leaky(d @ dw2 + db2)
    d = leaky(d @ dw3 + db3)
    recon = d @ dw4 + db4
    return recon, x, mu, logvar


if __name__ == "__main__":
    key = jax.random.PRNGKey(0)
    k_x, k_eps, k_p = jax.random.split(key, 3)

    x = jax.random.normal(k_x, (BATCH, N_FEAT), jnp.float32)
    # eps ~ N(0,1) generated outside the kernel (deterministic) to mirror torch.randn_like
    eps = jax.random.normal(k_eps, (BATCH, Z_DIM), jnp.float32)
    params = make_params(k_p)

    recon, x_out, mu, logvar = jax.block_until_ready(vae_forward(x, eps, params))

    r_ref, _, mu_ref, lv_ref = vae_forward_ref(x, eps, params)
    assert recon.shape == (BATCH, N_FEAT)
    assert mu.shape == (BATCH, Z_DIM) and logvar.shape == (BATCH, Z_DIM)
    assert jnp.allclose(recon, r_ref, atol=1e-5, rtol=1e-5)
    assert jnp.allclose(mu, mu_ref, atol=1e-5, rtol=1e-5)
    assert jnp.allclose(logvar, lv_ref, atol=1e-5, rtol=1e-5)

    print("KERNEL_OK")
</pallas_src>

<mosaic_0001>
module attributes {stable_mosaic.version = 11 : i64} {
  func.func @_vae_kernel(%arg0: i32, %arg1: memref<128x128xf32, #tpu.memory_space<vmem>>, %arg2: memref<128x128xf32, #tpu.memory_space<vmem>>, %arg3: memref<128x1152xf32, #tpu.memory_space<vmem>>, %arg4: memref<1x1152xf32, #tpu.memory_space<vmem>>, %arg5: memref<128x128xf32, #tpu.memory_space<vmem>>, %arg6: memref<128x256xf32, #tpu.memory_space<vmem>>) attributes {dimension_semantics = [#tpu.dimension_semantics<parallel>], iteration_bounds = array<i64: 4>, scalar_prefetch = 0 : i64, scratch_operands = 0 : i64, tpu.core_type = #tpu.core_type<tc>, window_params = [{transform_indices = @transform_0, window_bounds = array<i64: 128, 128>}, {transform_indices = @transform_1, window_bounds = array<i64: 128, 128>}, {pipeline_mode = #tpu.pipeline_mode<synchronous>, transform_indices = @transform_2, window_bounds = array<i64: 128, 1152>}, {pipeline_mode = #tpu.pipeline_mode<synchronous>, transform_indices = @transform_3, window_bounds = array<i64: 1, 1152>}, {transform_indices = @transform_4, window_bounds = array<i64: 128, 128>}, {transform_indices = @transform_5, window_bounds = array<i64: 128, 256>}]} {
    %c0 = arith.constant 0 : index
    %c0_0 = arith.constant 0 : index
    %0 = vector.load %arg1[%c0, %c0_0] : memref<128x128xf32, #tpu.memory_space<vmem>>, vector<128x128xf32>
    %c0_1 = arith.constant 0 : index
    %c0_2 = arith.constant 0 : index
    %1 = vector.load %arg3[%c0_1, %c0_2] : memref<128x1152xf32, #tpu.memory_space<vmem>>, vector<128x128xf32>
    %c0_3 = arith.constant 0 : index
    %c0_4 = arith.constant 0 : index
    %2 = vector.load %arg4[%c0_3, %c0_4] : memref<1x1152xf32, #tpu.memory_space<vmem>>, vector<1x128xf32>
    %cst = arith.constant dense<0.000000e+00> : vector<128x128xf32>
    %3 = tpu.matmul %0, %1, %cst {dimension_numbers = #tpu.dot_dimension_numbers<[1], [0], [0], [1], [0, 0, 1, 1], [], []>} : vector<128x128xf32>, vector<128x128xf32>, vector<128x128xf32> -> vector<128x128xf32>
    %4 = vector.broadcast %2 : vector<1x128xf32> to vector<128x128xf32>
    %5 = arith.addf %3, %4 : vector<128x128xf32>
    %cst_5 = arith.constant 0.000000e+00 : f32
    %6 = vector.broadcast %cst_5 : f32 to vector<128x128xf32>
    %7 = arith.cmpf ogt, %5, %6 : vector<128x128xf32>
    %cst_6 = arith.constant 0.00999999977 : f32
    %8 = vector.broadcast %cst_6 : f32 to vector<128x128xf32>
    %9 = arith.mulf %8, %5 : vector<128x128xf32>
    %10 = arith.select %7, %5, %9 : vector<128x128xi1>, vector<128x128xf32>
    %c0_7 = arith.constant 0 : index
    %c128 = arith.constant 128 : index
    %11 = vector.load %arg3[%c0_7, %c128] : memref<128x1152xf32, #tpu.memory_space<vmem>>, vector<128x128xf32>
    %c0_8 = arith.constant 0 : index
    %c128_9 = arith.constant 128 : index
    %12 = vector.load %arg4[%c0_8, %c128_9] : memref<1x1152xf32, #tpu.memory_space<vmem>>, vector<1x128xf32>
    %cst_10 = arith.constant dense<0.000000e+00> : vector<128x128xf32>
    %13 = tpu.matmul %10, %11, %cst_10 {dimension_numbers = #tpu.dot_dimension_numbers<[1], [0], [0], [1], [0, 0, 1, 1], [], []>} : vector<128x128xf32>, vector<128x128xf32>, vector<128x128xf32> -> vector<128x128xf32>
    %14 = vector.broadcast %12 : vector<1x128xf32> to vector<128x128xf32>
    %15 = arith.addf %13, %14 : vector<128x128xf32>
    %cst_11 = arith.constant 0.000000e+00 : f32
    %16 = vector.broadcast %cst_11 : f32 to vector<128x128xf32>
    %17 = arith.cmpf ogt, %15, %16 : vector<128x128xf32>
    %cst_12 = arith.constant 0.00999999977 : f32
    %18 = vector.broadcast %cst_12 : f32 to vector<128x128xf32>
    %19 = arith.mulf %18, %15 : vector<128x128xf32>
    %20 = arith.select %17, %15, %19 : vector<128x128xi1>, vector<128x128xf32>
    %c0_13 = arith.constant 0 : index
    %c256 = arith.constant 256 : index
    %21 = vector.load %arg3[%c0_13, %c256] : memref<128x1152xf32, #tpu.memory_space<vmem>>, vector<128x128xf32>
    %c0_14 = arith.constant 0 : index
    %c256_15 = arith.constant 256 : index
    %22 = vector.load %arg4[%c0_14, %c256_15] : memref<1x1152xf32, #tpu.memory_space<vmem>>, vector<1x128xf32>
    %cst_16 = arith.constant dense<0.000000e+00> : vector<128x128xf32>
    %23 = tpu.matmul %20, %21, %cst_16 {dimension_numbers = #tpu.dot_dimension_numbers<[1], [0], [0], [1], [0, 0, 1, 1], [], []>} : vector<128x128xf32>, vector<128x128xf32>, vector<128x128xf32> -> vector<128x128xf32>
    %24 = vector.broadcast %22 : vector<1x128xf32> to vector<128x128xf32>
    %25 = arith.addf %23, %24 : vector<128x128xf32>
    %cst_17 = arith.constant 0.000000e+00 : f32
    %26 = vector.broadcast %cst_17 : f32 to vector<128x128xf32>
    %27 = arith.cmpf ogt, %25, %26 : vector<128x128xf32>
    %cst_18 = arith.constant 0.00999999977 : f32
    %28 = vector.broadcast %cst_18 : f32 to vector<128x128xf32>
    %29 = arith.mulf %28, %25 : vector<128x128xf32>
    %30 = arith.select %27, %25, %29 : vector<128x128xi1>, vector<128x128xf32>
    %c0_19 = arith.constant 0 : index
    %c384 = arith.constant 384 : index
    %31 = vector.load %arg3[%c0_19, %c384] : memref<128x1152xf32, #tpu.memory_space<vmem>>, vector<128x256xf32>
    %c0_20 = arith.constant 0 : index
    %c384_21 = arith.constant 384 : index
    %32 = vector.load %arg4[%c0_20, %c384_21] : memref<1x1152xf32, #tpu.memory_space<vmem>>, vector<1x256xf32>
    %cst_22 = arith.constant dense<0.000000e+00> : vector<128x256xf32>
    %33 = tpu.matmul %30, %31, %cst_22 {dimension_numbers = #tpu.dot_dimension_numbers<[1], [0], [0], [1], [0, 0, 1, 1], [], []>} : vector<128x128xf32>, vector<128x256xf32>, vector<128x256xf32> -> vector<128x256xf32>
    %34 = vector.broadcast %32 : vector<1x256xf32> to vector<128x256xf32>
    %35 = arith.addf %33, %34 : vector<128x256xf32>
    %36 = vector.extract_strided_slice %35 {offsets = [0, 0], sizes = [128, 128], strides = [1, 1]} : vector<128x256xf32> to vector<128x128xf32>
    %37 = vector.extract_strided_slice %35 {offsets = [0, 128], sizes = [128, 128], strides = [1, 1]} : vector<128x256xf32> to vector<128x128xf32>
    %c0_23 = arith.constant 0 : index
    %c0_24 = arith.constant 0 : index
    %38 = vector.load %arg2[%c0_23, %c0_24] : memref<128x128xf32, #tpu.memory_space<vmem>>, vector<128x128xf32>
    %cst_25 = arith.constant 5.000000e-01 : f32
    %39 = vector.broadcast %cst_25 : f32 to vector<128x128xf32>
    %40 = arith.mulf %39, %37 : vector<128x128xf32>
    %41 = math.exp %40 : vector<128x128xf32>
    %42 = arith.mulf %38, %41 : vector<128x128xf32>
    %43 = arith.addf %42, %36 : vector<128x128xf32>
    %c0_26 = arith.constant 0 : index
    %c640 = arith.constant 640 : index
    %44 = vector.load %arg3[%c0_26, %c640] : memref<128x1152xf32, #tpu.memory_space<vmem>>, vector<128x128xf32>
    %c0_27 = arith.constant 0 : index
    %c640_28 = arith.constant 640 : index
    %45 = vector.load %arg4[%c0_27, %c640_28] : memref<1x1152xf32, #tpu.memory_space<vmem>>, vector<1x128xf32>
    %cst_29 = arith.constant dense<0.000000e+00> : vector<128x128xf32>
    %46 = tpu.matmul %43, %44, %cst_29 {dimension_numbers = #tpu.dot_dimension_numbers<[1], [0], [0], [1], [0, 0, 1, 1], [], []>} : vector<128x128xf32>, vector<128x128xf32>, vector<128x128xf32> -> vector<128x128xf32>
    %47 = vector.broadcast %45 : vector<1x128xf32> to vector<128x128xf32>
    %48 = arith.addf %46, %47 : vector<128x128xf32>
    %cst_30 = arith.constant 0.000000e+00 : f32
    %49 = vector.broadcast %cst_30 : f32 to vector<128x128xf32>
    %50 = arith.cmpf ogt, %48, %49 : vector<128x128xf32>
    %cst_31 = arith.constant 0.00999999977 : f32
    %51 = vector.broadcast %cst_31 : f32 to vector<128x128xf32>
    %52 = arith.mulf %51, %48 : vector<128x128xf32>
    %53 = arith.select %50, %48, %52 : vector<128x128xi1>, vector<128x128xf32>
    %c0_32 = arith.constant 0 : index
    %c768 = arith.constant 768 : index
    %54 = vector.load %arg3[%c0_32, %c768] : memref<128x1152xf32, #tpu.memory_space<vmem>>, vector<128x128xf32>
    %c0_33 = arith.constant 0 : index
    %c768_34 = arith.constant 768 : index
    %55 = vector.load %arg4[%c0_33, %c768_34] : memref<1x1152xf32, #tpu.memory_space<vmem>>, vector<1x128xf32>
    %cst_35 = arith.constant dense<0.000000e+00> : vector<128x128xf32>
    %56 = tpu.matmul %53, %54, %cst_35 {dimension_numbers = #tpu.dot_dimension_numbers<[1], [0], [0], [1], [0, 0, 1, 1], [], []>} : vector<128x128xf32>, vector<128x128xf32>, vector<128x128xf32> -> vector<128x128xf32>
    %57 = vector.broadcast %55 : vector<1x128xf32> to vector<128x128xf32>
    %58 = arith.addf %56, %57 : vector<128x128xf32>
    %cst_36 = arith.constant 0.000000e+00 : f32
    %59 = vector.broadcast %cst_36 : f32 to vector<128x128xf32>
    %60 = arith.cmpf ogt, %58, %59 : vector<128x128xf32>
    %cst_37 = arith.constant 0.00999999977 : f32
    %61 = vector.broadcast %cst_37 : f32 to vector<128x128xf32>
    %62 = arith.mulf %61, %58 : vector<128x128xf32>
    %63 = arith.select %60, %58, %62 : vector<128x128xi1>, vector<128x128xf32>
    %c0_38 = arith.constant 0 : index
    %c896 = arith.constant 896 : index
    %64 = vector.load %arg3[%c0_38, %c896] : memref<128x1152xf32, #tpu.memory_space<vmem>>, vector<128x128xf32>
    %c0_39 = arith.constant 0 : index
    %c896_40 = arith.constant 896 : index
    %65 = vector.load %arg4[%c0_39, %c896_40] : memref<1x1152xf32, #tpu.memory_space<vmem>>, vector<1x128xf32>
    %cst_41 = arith.constant dense<0.000000e+00> : vector<128x128xf32>
    %66 = tpu.matmul %63, %64, %cst_41 {dimension_numbers = #tpu.dot_dimension_numbers<[1], [0], [0], [1], [0, 0, 1, 1], [], []>} : vector<128x128xf32>, vector<128x128xf32>, vector<128x128xf32> -> vector<128x128xf32>
    %67 = vector.broadcast %65 : vector<1x128xf32> to vector<128x128xf32>
    %68 = arith.addf %66, %67 : vector<128x128xf32>
    %cst_42 = arith.constant 0.000000e+00 : f32
    %69 = vector.broadcast %cst_42 : f32 to vector<128x128xf32>
    %70 = arith.cmpf ogt, %68, %69 : vector<128x128xf32>
    %cst_43 = arith.constant 0.00999999977 : f32
    %71 = vector.broadcast %cst_43 : f32 to vector<128x128xf32>
    %72 = arith.mulf %71, %68 : vector<128x128xf32>
    %73 = arith.select %70, %68, %72 : vector<128x128xi1>, vector<128x128xf32>
    %c0_44 = arith.constant 0 : index
    %c1024 = arith.constant 1024 : index
    %74 = vector.load %arg3[%c0_44, %c1024] : memref<128x1152xf32, #tpu.memory_space<vmem>>, vector<128x128xf32>
    %c0_45 = arith.constant 0 : index
    %c1024_46 = arith.constant 1024 : index
    %75 = vector.load %arg4[%c0_45, %c1024_46] : memref<1x1152xf32, #tpu.memory_space<vmem>>, vector<1x128xf32>
    %cst_47 = arith.constant dense<0.000000e+00> : vector<128x128xf32>
    %76 = tpu.matmul %73, %74, %cst_47 {dimension_numbers = #tpu.dot_dimension_numbers<[1], [0], [0], [1], [0, 0, 1, 1], [], []>} : vector<128x128xf32>, vector<128x128xf32>, vector<128x128xf32> -> vector<128x128xf32>
    %77 = vector.broadcast %75 : vector<1x128xf32> to vector<128x128xf32>
    %78 = arith.addf %76, %77 : vector<128x128xf32>
    %c0_48 = arith.constant 0 : index
    %c0_49 = arith.constant 0 : index
    %79 = vector.load %arg5[%c0_48, %c0_49] : memref<128x128xf32, #tpu.memory_space<vmem>>, vector<128x128xf32>
    tpu.vector_store %arg5[%c0_48, %c0_49], %78 {strides = array<i32>} : memref<128x128xf32, #tpu.memory_space<vmem>>, vector<128x128xf32>,
    %c0_50 = arith.constant 0 : index
    %c0_51 = arith.constant 0 : index
    %80 = vector.load %arg6[%c0_50, %c0_51] : memref<128x256xf32, #tpu.memory_space<vmem>>, vector<128x256xf32>
    tpu.vector_store %arg6[%c0_50, %c0_51], %35 {strides = array<i32>} : memref<128x256xf32, #tpu.memory_space<vmem>>, vector<128x256xf32>,
    return
  }
  func.func @transform_0(%arg0: i32) -> (i32, i32) {
    %c0_i32 = arith.constant 0 : i32
    %c0_i32_0 = arith.constant 0 : i32
    return %arg0, %c0_i32 : i32, i32
  }
  func.func @transform_1(%arg0: i32) -> (i32, i32) {
    %c0_i32 = arith.constant 0 : i32
    %c0_i32_0 = arith.constant 0 : i32
    return %arg0, %c0_i32 : i32, i32
  }
  func.func @transform_2(%arg0: i32) -> (i32, i32) {
    %c0_i32 = arith.constant 0 : i32
    %c0_i32_0 = arith.constant 0 : i32
    %c0_i32_1 = arith.constant 0 : i32
    return %c0_i32, %c0_i32_0 : i32, i32
  }
  func.func @transform_3(%arg0: i32) -> (i32, i32) {
    %c0_i32 = arith.constant 0 : i32
    %c0_i32_0 = arith.constant 0 : i32
    %c0_i32_1 = arith.constant 0 : i32
    return %c0_i32, %c0_i32_0 : i32, i32
  }
  func.func @transform_4(%arg0: i32) -> (i32, i32) {
    %c0_i32 = arith.constant 0 : i32
    %c0_i32_0 = arith.constant 0 : i32
    return %arg0, %c0_i32 : i32, i32
  }
  func.func @transform_5(%arg0: i32) -> (i32, i32) {
    %c0_i32 = arith.constant 0 : i32
    %c0_i32_0 = arith.constant 0 : i32
    return %arg0, %c0_i32 : i32, i32
  }
}

</mosaic_0001>

<llo_original>
// kernel: tpu_custom_call.1
$region0: #{tpu_custom_call.1}
  #allocation0 [shape = 'u32[]', space=smem, size = 0x4, offset = 0x4, fixed_abs, tag = 'smem constant byte address 0x4 - core index']
  #allocation1 [shape = 'u32[144,128]{1,0:T(1,128)}', space=vmem, size = 0x12000, scoped, tag = 'internal scratch']
  %s0 = inlined_call_operand.hbm [shape: f32[512,128], index: 0, kind: input, shape index: {}]
  %s1 = inlined_call_operand.hbm [shape: f32[512,128], index: 1, kind: input, shape index: {}]
  %s2 = inlined_call_operand.hbm [shape: f32[128,1152], index: 2, kind: input, shape index: {}]
  %s3 = inlined_call_operand.vmem [shape: f32[1,1152], index: 3, kind: input, shape index: {}]
  %s4 = inlined_call_operand.hbm [shape: f32[512,128], index: 4, kind: output, shape index: {0}]
  %s5 = inlined_call_operand.hbm [shape: f32[512,256], index: 5, kind: output, shape index: {1}]
  %6 = xla_tuple %s4, %s5
  %s7 = sld [smem:[#allocation0]]
  $region69: #{tpu_custom_call.1} parent=0
    _
  %s9 = ssub.s32 1, %s7
  %s10 = scalar_select 0, %s9, %s7
  $region1: #{tpu_custom_call.1} parent=0
    #allocation2 [shape = 'u8[131072]{0}', space=vmem, size = 0x20000, scoped, tag = 'input window, operand 0']
    #allocation3 [shape = 's32[2]{0}', space=sflag, size = 0x8, scoped, tag = 'scoped memory for tpu_custom_call.1']
    #allocation4 [shape = 's32[2]{0}', space=sflag, size = 0x8, scoped, tag = 'scoped memory for tpu_custom_call.1']
    #allocation5 [shape = 'u8[131072]{0}', space=vmem, size = 0x20000, scoped, tag = 'input window, operand 1']
    #allocation6 [shape = 's32[2]{0}', space=sflag, size = 0x8, scoped, tag = 'scoped memory for tpu_custom_call.1']
    #allocation7 [shape = 'u8[589824]{0}', space=vmem, size = 0x90000, scoped, tag = 'input window, operand 2, single buffered']
    #allocation8 [shape = 'u8[131072]{0}', space=vmem, size = 0x20000, scoped, tag = 'output window, operand 0']
    #allocation9 [shape = 'u8[262144]{0}', space=vmem, size = 0x40000, scoped, tag = 'output window, operand 1']
    #allocation10 [shape = 's32[2]{0}', space=sflag, size = 0x8, scoped, tag = 'scoped memory for tpu_custom_call.1']
    %11 = vsyncpa [#allocation3], 0
    %s12 = scalar_lea.sflag [#allocation3], 1
    %13 = vsyncpa %s12, 0
    %14 = vsyncpa [#allocation6], 0
    %s15 = scalar_lea.sflag [#allocation6], 1
    %16 = vsyncpa %s15, 0
    %17 = vsyncpa [#allocation4], 0
    %s18 = scalar_lea.sflag [#allocation4], 1
    %19 = vsyncpa %s18, 0
    %20 = vsyncpa [#allocation10], 0
    %s21 = scalar_lea.sflag [#allocation10], 1
    %22 = vsyncpa %s21, 0
    loop: start=0, step=1, limit=6
    $region2: #{tpu_custom_call.1} parent=1 // loop_pre_header
      _
    $region3: #{tpu_custom_call.1} parent=1 // loop_header
      %s24 = sphi 0, %s28
      %p25 = scmp.ge.s32.totalorder %s24, 6
      %s34 = sphi 0, %s36
      %s37 = sphi 0, %s34
      %s38 = sphi 0, %s37
      %s54 = sphi 0, %s38
      %s60 = sphi 0, %s62
      %s63 = sphi 0, %s60
      %s64 = sphi 0, %s63
      %s80 = sphi 0, %s64
      %s84 = sphi 0, %s84
      %s86 = sphi 0, %s84
      %s87 = sphi 0, %s86
      %s101 = sphi 0, %s87
      %s105 = sphi 0, %s105
      %s107 = sphi 0, %s105
      %s108 = sphi 0, %s107
      %s122 = sphi 0, %s108
      %s128 = sphi 0, %s130
      %s131 = sphi 0, %s128
      %s132 = sphi 0, %s131
      %s148 = sphi 0, %s132
      %s154 = sphi 0, %s156
      %s157 = sphi 0, %s154
      %s158 = sphi 0, %s157
      %s174 = sphi 0, %s158
    $region4: #{tpu_custom_call.1} parent=1 // loop_header_branch
      %27 = sbr.rel (%p25) target = $region8
    $region5: #{tpu_custom_call.1} parent=1 // loop_body
      %s29 = ssub.s32 %s24, 1
      %s30 = ssub.s32 %s24, 2
      %s31 = sadd.s32 %s24, 1
      %s32 = ssub.s32 %s24, %s31
      %p33 = scmp.eq.s32.totalorder %s32, 0
      %s35 = sadd.s32 %s34, 1
      %s36 = scalar_select %p33, %s34, %s35
      %p39 = pneg %p33
      %p40 = scmp.eq.s32.totalorder %s24, 3
      %p41 = por %p39, %p40
      %p42 = scmp.ne.s32.totalorder %s34, %s37
      %p43 = scmp.eq.s32.totalorder %s24, 0
      %p44 = por %p42, %p43
      %p45 = scmp.ne.s32.totalorder %s34, %s37
      %p46 = scmp.eq.s32.totalorder %s29, 3
      %p47 = por %p45, %p46
      %p48 = scmp.ne.s32.totalorder %s37, %s38
      %p49 = scmp.eq.s32.totalorder %s29, 0
      %p50 = por %p48, %p49
      %p51 = scmp.ne.s32.totalorder %s37, %s38
      %p52 = scmp.eq.s32.totalorder %s30, 3
      %p53 = por %p51, %p52
      %p55 = scmp.ne.s32.totalorder %s38, %s54
      %p56 = scmp.eq.s32.totalorder %s30, 0
      %p57 = por %p55, %p56
      %s58 = ssub.s32 %s24, %s31
      %p59 = scmp.eq.s32.totalorder %s58, 0
      %s61 = sadd.s32 %s60, 1
      %s62 = scalar_select %p59, %s60, %s61
      %p65 = pneg %p59
      %p66 = scmp.eq.s32.totalorder %s24, 3
      %p67 = por %p65, %p66
      %p68 = scmp.ne.s32.totalorder %s60, %s63
      %p69 = scmp.eq.s32.totalorder %s24, 0
      %p70 = por %p68, %p69
      %p71 = scmp.ne.s32.totalorder %s60, %s63
      %p72 = scmp.eq.s32.totalorder %s29, 3
      %p73 = por %p71, %p72
      %p74 = scmp.ne.s32.totalorder %s63, %s64
      %p75 = scmp.eq.s32.totalorder %s29, 0
      %p76 = por %p74, %p75
      %p77 = scmp.ne.s32.totalorder %s63, %s64
      %p78 = scmp.eq.s32.totalorder %s30, 3
      %p79 = por %p77, %p78
      %p81 = scmp.ne.s32.totalorder %s64, %s80
      %p82 = scmp.eq.s32.totalorder %s30, 0
      %p83 = por %p81, %p82
      %s85 = sadd.s32 %s84, 1
      %p88 = scmp.eq.s32.totalorder %s24, 3
      %p89 = scmp.ne.s32.totalorder %s84, %s86
      %p90 = scmp.eq.s32.totalorder %s24, 0
      %p91 = por %p89, %p90
      %p92 = scmp.ne.s32.totalorder %s84, %s86
      %p93 = scmp.eq.s32.totalorder %s29, 3
      %p94 = por %p92, %p93
      %p95 = scmp.ne.s32.totalorder %s86, %s87
      %p96 = scmp.eq.s32.totalorder %s29, 0
      %p97 = por %p95, %p96
      %p98 = scmp.ne.s32.totalorder %s86, %s87
      %p99 = scmp.eq.s32.totalorder %s30, 3
      %p100 = por %p98, %p99
      %p102 = scmp.ne.s32.totalorder %s87, %s101
      %p103 = scmp.eq.s32.totalorder %s30, 0
      %p104 = por %p102, %p103
      %s106 = sadd.s32 %s105, 1
      %p109 = scmp.eq.s32.totalorder %s24, 3
      %p110 = scmp.ne.s32.totalorder %s105, %s107
      %p111 = scmp.eq.s32.totalorder %s24, 0
      %p112 = por %p110, %p111
      %p113 = scmp.ne.s32.totalorder %s105, %s107
      %p114 = scmp.eq.s32.totalorder %s29, 3
      %p115 = por %p113, %p114
      %p116 = scmp.ne.s32.totalorder %s107, %s108
      %p117 = scmp.eq.s32.totalorder %s29, 0
      %p118 = por %p116, %p117
      %p119 = scmp.ne.s32.totalorder %s107, %s108
      %p120 = scmp.eq.s32.totalorder %s30, 3
      %p121 = por %p119, %p120
      %p123 = scmp.ne.s32.totalorder %s108, %s122
      %p124 = scmp.eq.s32.totalorder %s30, 0
      %p125 = por %p123, %p124
      %s126 = ssub.s32 %s24, %s31
      %p127 = scmp.eq.s32.totalorder %s126, 0
      %s129 = sadd.s32 %s128, 1
      %s130 = scalar_select %p127, %s128, %s129
      %p133 = pneg %p127
      %p134 = scmp.eq.s32.totalorder %s24, 3
      %p135 = por %p133, %p134
      %p136 = scmp.ne.s32.totalorder %s128, %s131
      %p137 = scmp.eq.s32.totalorder %s24, 0
      %p138 = por %p136, %p137
      %p139 = scmp.ne.s32.totalorder %s128, %s131
      %p140 = scmp.eq.s32.totalorder %s29, 3
      %p141 = por %p139, %p140
      %p142 = scmp.ne.s32.totalorder %s131, %s132
      %p143 = scmp.eq.s32.totalorder %s29, 0
      %p144 = por %p142, %p143
      %p145 = scmp.ne.s32.totalorder %s131, %s132
      %p146 = scmp.eq.s32.totalorder %s30, 3
      %p147 = por %p145, %p146
      %p149 = scmp.ne.s32.totalorder %s132, %s148
      %p150 = scmp.eq.s32.totalorder %s30, 0
      %p151 = por %p149, %p150
      %s152 = ssub.s32 %s24, %s31
      %p153 = scmp.eq.s32.totalorder %s152, 0
      %s155 = sadd.s32 %s154, 1
      %s156 = scalar_select %p153, %s154, %s155
      %p159 = pneg %p153
      %p160 = scmp.eq.s32.totalorder %s24, 3
      %p161 = por %p159, %p160
      %p162 = scmp.ne.s32.totalorder %s154, %s157
      %p163 = scmp.eq.s32.totalorder %s24, 0
      %p164 = por %p162, %p163
      %p165 = scmp.ne.s32.totalorder %s154, %s157
      %p166 = scmp.eq.s32.totalorder %s29, 3
      %p167 = por %p165, %p166
      %p168 = scmp.ne.s32.totalorder %s157, %s158
      %p169 = scmp.eq.s32.totalorder %s29, 0
      %p170 = por %p168, %p169
      %p171 = scmp.ne.s32.totalorder %s157, %s158
      %p172 = scmp.eq.s32.totalorder %s30, 3
      %p173 = por %p171, %p172
      %p175 = scmp.ne.s32.totalorder %s158, %s174
      %p176 = scmp.eq.s32.totalorder %s30, 0
      %p177 = por %p175, %p176
      %p178 = scmp.le.s32.totalorder 1, %s24
      %p179 = scmp.lt.s32.totalorder %s24, 5
      %p180 = pnand %p178, %p179
      %p181 = pneg %p180
      // Predicated region
      $region9: #{tpu_custom_call.1} parent=5 // pred_check
        _
      $region10: #{tpu_custom_call.1} parent=5 // pred_check_branch
        %183 = sbr.rel (%p180) target = $region12
      $region11: #{tpu_custom_call.1} parent=5 // pred_region
        %s184 = ssub.s32 %s24, 1
        // Predicated region
        $region13: #{tpu_custom_call.1} parent=11 // pred_check
          %p185 = pneg %p97
        $region14: #{tpu_custom_call.1} parent=11 // pred_check_branch
          %187 = sbr.rel (%p185) target = $region16
        $region15: #{tpu_custom_call.1} parent=11 // pred_region
          %s189 = ssub.s32 18432, 18432
          %190 = vsyncadd [#allocation6], %s189
          %s191 = sshll.u32 [#allocation7], 4
          %s192 = int_to_ptr.vmem [resolvable:$true] %s191
          %197 = dma.hbm_to_vmem [thread:$0]  %s2, 18432, %s192, [#allocation6], 1152, 1152, 72
        $region16: #{tpu_custom_call.1} parent=11 // pred_fallthru
          _
        // Predicated region
        $region17: #{tpu_custom_call.1} parent=11 // pred_check
          %p198 = pneg %p118
        $region18: #{tpu_custom_call.1} parent=11 // pred_check_branch
          %200 = sbr.rel (%p198) target = $region20
        $region19: #{tpu_custom_call.1} parent=11 // pred_region
          _
        $region20: #{tpu_custom_call.1} parent=11 // pred_fallthru
          _
      $region12: #{tpu_custom_call.1} parent=5 // pred_fallthru
        _
      %p201 = scmp.lt.s32.totalorder %s24, 4
      // Predicated region
      $region21: #{tpu_custom_call.1} parent=5 // pred_check
        %p202 = pneg %p201
      $region22: #{tpu_custom_call.1} parent=5 // pred_check_branch
        %204 = sbr.rel (%p202) target = $region24
      $region23: #{tpu_custom_call.1} parent=5 // pred_region
        // Predicated region
        $region25: #{tpu_custom_call.1} parent=23 // pred_check
          %p205 = pneg %p44
        $region26: #{tpu_custom_call.1} parent=23 // pred_check_branch
          %207 = sbr.rel (%p205) target = $region28
        $region27: #{tpu_custom_call.1} parent=23 // pred_region
          %s208 = sand.u32 %s34, 1
          %s209 = scalar_lea.sflag [#allocation3], %s208
          %s210 = sand.u32 %s34, 1
          %s211 = smul.addr %s210, 128
          %s212 = scalar_lea.vmem [#allocation2], %s211
          %s213 = smul.u32 16, %s24
          %s215 = ssub.s32 2048, 2048
          %216 = vsyncadd %s209, %s215
          %s217 = smul.addr %s213, 128
          %s218 = scalar_lea.hbm %s0, %s217
          %s219 = sshll.u32 %s212, 4
          %s220 = int_to_ptr.vmem [resolvable:$true] %s219
          %225 = dma.hbm_to_vmem [thread:$0]  %s218, 2048, %s220, %s209, 128, 128, 8
        $region28: #{tpu_custom_call.1} parent=23 // pred_fallthru
          _
        // Predicated region
        $region29: #{tpu_custom_call.1} parent=23 // pred_check
          %p226 = pneg %p70
        $region30: #{tpu_custom_call.1} parent=23 // pred_check_branch
          %228 = sbr.rel (%p226) target = $region32
        $region31: #{tpu_custom_call.1} parent=23 // pred_region
          %s229 = sand.u32 %s24, 1
          %s230 = scalar_lea.sflag [#allocation6], %s229
          %s231 = sand.u32 %s60, 1
          %s232 = smul.addr %s231, 128
          %s233 = scalar_lea.vmem [#allocation5], %s232
          %s234 = smul.u32 16, %s24
          %s236 = ssub.s32 2048, 2048
          %237 = vsyncadd %s230, %s236
          %s238 = smul.addr %s234, 128
          %s239 = scalar_lea.hbm %s1, %s238
          %s240 = sshll.u32 %s233, 4
          %s241 = int_to_ptr.vmem [resolvable:$true] %s240
          %246 = dma.hbm_to_vmem [thread:$0]  %s239, 2048, %s241, %s230, 128, 128, 8
        $region32: #{tpu_custom_call.1} parent=23 // pred_fallthru
          _
      $region24: #{tpu_custom_call.1} parent=5 // pred_fallthru
        _
      %p247 = scmp.le.s32.totalorder 1, %s24
      %p248 = scmp.lt.s32.totalorder %s24, 5
      %p249 = pnand %p247, %p248
      %p250 = pneg %p249
      // Predicated region
      $region33: #{tpu_custom_call.1} parent=5 // pred_check
        _
      $region34: #{tpu_custom_call.1} parent=5 // pred_check_branch
        %252 = sbr.rel (%p249) target = $region36
      $region35: #{tpu_custom_call.1} parent=5 // pred_region
        %s253 = ssub.s32 %s24, 1
        %s254 = sand.u32 %s37, 1
        %s255 = scalar_lea.sflag [#allocation3], %s254
        %s256 = sand.u32 %s37, 1
        %s257 = smul.addr %s256, 128
        %s258 = scalar_lea.vmem [#allocation2], %s257
        // Predicated region
        $region37: #{tpu_custom_call.1} parent=35 // pred_check
          %p259 = pneg %p50
        $region38: #{tpu_custom_call.1} parent=35 // pred_check_branch
          %261 = sbr.rel (%p259) target = $region40
        $region39: #{tpu_custom_call.1} parent=35 // pred_region
          %262 = dma.done %s255, 2048
        $region40: #{tpu_custom_call.1} parent=35 // pred_fallthru
          _
        %s263 = sand.u32 %s29, 1
        %s264 = scalar_lea.sflag [#allocation6], %s263
        %s265 = sand.u32 %s63, 1
        %s266 = smul.addr %s265, 128
        %s267 = scalar_lea.vmem [#allocation5], %s266
        // Predicated region
        $region41: #{tpu_custom_call.1} parent=35 // pred_check
          %p268 = pneg %p76
        $region42: #{tpu_custom_call.1} parent=35 // pred_check_branch
          %270 = sbr.rel (%p268) target = $region44
        $region43: #{tpu_custom_call.1} parent=35 // pred_region
          %271 = dma.done %s264, 2048
        $region44: #{tpu_custom_call.1} parent=35 // pred_fallthru
          _
        // Predicated region
        $region45: #{tpu_custom_call.1} parent=35 // pred_check
          %p272 = pneg %p97
        $region46: #{tpu_custom_call.1} parent=35 // pred_check_branch
          %274 = sbr.rel (%p272) target = $region48
        $region47: #{tpu_custom_call.1} parent=35 // pred_region
          %275 = dma.done [#allocation6], 18432
        $region48: #{tpu_custom_call.1} parent=35 // pred_fallthru
          _
        %s276 = sand.u32 %s37, 1
        %s277 = scalar_lea.sflag [#allocation3], %s276
        %s278 = sand.u32 %s37, 1
        %s279 = smul.addr %s278, 128
        %s280 = scalar_lea.vmem [#allocation2], %s279
        %p281 = pneg %p50
        %p282 = pneg %p47
        %s283 = sand.u32 %s29, 1
        %s284 = scalar_lea.sflag [#allocation6], %s283
        %s285 = sand.u32 %s63, 1
        %s286 = smul.addr %s285, 128
        %s287 = scalar_lea.vmem [#allocation5], %s286
        %p288 = pneg %p76
        %p289 = pneg %p73
        %p290 = pneg %p97
        %p291 = pneg %p94
        %p292 = pneg %p118
        %p293 = pneg %p115
        %p294 = pneg %p144
        %p295 = pneg %p141
        %s296 = sand.u32 %s131, 1
        %s297 = scalar_lea.sflag [#allocation4], %s296
        %s298 = sand.u32 %s131, 1
        %s299 = smul.addr %s298, 128
        %s300 = scalar_lea.vmem [#allocation8], %s299
        %p301 = pneg %p170
        %p302 = pneg %p167
        %s303 = sand.u32 %s157, 1
        %s304 = scalar_lea.sflag [#allocation10], %s303
        %s305 = sand.u32 %s157, 1
        %s306 = smul.addr %s305, 256
        %s307 = scalar_lea.vmem [#allocation9], %s306
        %s308 = smul.u32 16, %s29
        %s309 = smul.u32 16, %s29
        %s310 = smul.u32 16, %s29
        %s311 = smul.u32 16, %s29
        %v312 = vld [vmem:[%s258] sm:$0xff]
        %v313 = vld [vmem:[%s258 + $0x8] sm:$0xff]
        %v314 = vld [vmem:[%s258 + $0x10] sm:$0xff]
        %v315 = vld [vmem:[%s258 + $0x18] sm:$0xff]
        %v316 = vld [vmem:[%s258 + $0x20] sm:$0xff]
        %v317 = vld [vmem:[%s258 + $0x28] sm:$0xff]
        %v318 = vld [vmem:[%s258 + $0x30] sm:$0xff]
        %v319 = vld [vmem:[%s258 + $0x38] sm:$0xff]
        %v320 = vld [vmem:[%s258 + $0x40] sm:$0xff]
        %v321 = vld [vmem:[%s258 + $0x48] sm:$0xff]
        %v322 = vld [vmem:[%s258 + $0x50] sm:$0xff]
        %v323 = vld [vmem:[%s258 + $0x58] sm:$0xff]
        %v324 = vld [vmem:[%s258 + $0x60] sm:$0xff]
        %v325 = vld [vmem:[%s258 + $0x68] sm:$0xff]
        %v326 = vld [vmem:[%s258 + $0x70] sm:$0xff]
        %v327 = vld [vmem:[%s258 + $0x78] sm:$0xff]
        %v328 = vld [vmem:[#allocation7] sm:$0xff]
        %v329 = vld [vmem:[#allocation7 + $0x48] sm:$0xff]
        %v330 = vld [vmem:[#allocation7 + $0x90] sm:$0xff]
        %v331 = vld [vmem:[#allocation7 + $0xd8] sm:$0xff]
        %v332 = vld [vmem:[#allocation7 + $0x120] sm:$0xff]
        %v333 = vld [vmem:[#allocation7 + $0x168] sm:$0xff]
        %v334 = vld [vmem:[#allocation7 + $0x1b0] sm:$0xff]
        %v335 = vld [vmem:[#allocation7 + $0x1f8] sm:$0xff]
        %v336 = vld [vmem:[#allocation7 + $0x240] sm:$0xff]
        %v337 = vld [vmem:[#allocation7 + $0x288] sm:$0xff]
        %v338 = vld [vmem:[#allocation7 + $0x2d0] sm:$0xff]
        %v339 = vld [vmem:[#allocation7 + $0x318] sm:$0xff]
        %v340 = vld [vmem:[#allocation7 + $0x360] sm:$0xff]
        %v341 = vld [vmem:[#allocation7 + $0x3a8] sm:$0xff]
        %v342 = vld [vmem:[#allocation7 + $0x3f0] sm:$0xff]
        %v343 = vld [vmem:[#allocation7 + $0x438] sm:$0xff]
        %v344 = vld [vmem:[%s3] sm:$0x1]
        %v346 = vlaneseq
        %v347 = vshrl.u32 %v346, 7
        %v348 = vsub.s32 0, %v347
        %v349 = vrot.slane %v344, %v348
        %351 = vmatprep.subr.mxu0 0.0
        %352 = vmatpush1.msra.mxu0 %v328
        %353 = vmatprep.subr.mxu0 0.0
        %354 = vmatpush1.msra.mxu0 %v329
        %355 = vmatprep.subr.mxu0 0.0
        %356 = vmatpush1.msra.mxu0 %v330
        %357 = vmatprep.subr.mxu0 0.0
        %358 = vmatpush1.msra.mxu0 %v331
        %359 = vmatprep.subr.mxu0 0.0
        %360 = vmatpush1.msra.mxu0 %v332
        %361 = vmatprep.subr.mxu0 0.0
        %362 = vmatpush1.msra.mxu0 %v333
        %363 = vmatprep.subr.mxu0 0.0
        %364 = vmatpush1.msra.mxu0 %v334
        %365 = vmatprep.subr.mxu0 0.0
        %366 = vmatpush1.msra.mxu0 %v335
        %367 = vmatprep.subr.mxu0 0.0
        %368 = vmatpush1.msra.mxu0 %v336
        %369 = vmatprep.subr.mxu0 0.0
        %370 = vmatpush1.msra.mxu0 %v337
        %371 = vmatprep.subr.mxu0 0.0
        %372 = vmatpush1.msra.mxu0 %v338
        %373 = vmatprep.subr.mxu0 0.0
        %374 = vmatpush1.msra.mxu0 %v339
        %375 = vmatprep.subr.mxu0 0.0
        %376 = vmatpush1.msra.mxu0 %v340
        %377 = vmatprep.subr.mxu0 0.0
        %378 = vmatpush1.msra.mxu0 %v341
        %379 = vmatprep.subr.mxu0 0.0
        %380 = vmatpush1.msra.mxu0 %v342
        %381 = vmatprep.subr.mxu0 0.0
        %382 = vmatpush1.msra.mxu0 %v343
        %383 = vmatprep.subr.mxu0 0.0
        %384 = vmatpush1.msra.mxu0 0.0
        %385 = vmatprep.subr.mxu0 0.0
        %386 = vmatpush1.msra.mxu0 0.0
        %387 = vmatprep.subr.mxu0 0.0
        %388 = vmatpush1.msra.mxu0 0.0
        %389 = vmatprep.subr.mxu0 0.0
        %390 = vmatpush1.msra.mxu0 0.0
        %391 = vmatprep.subr.mxu0 0.0
        %392 = vmatpush1.msra.mxu0 0.0
        %393 = vmatprep.subr.mxu0 0.0
        %394 = vmatpush1.msra.mxu0 0.0
        %395 = vmatprep.subr.mxu0 0.0
        %396 = vmatpush1.msra.mxu0 0.0
        %397 = vmatprep.subr.mxu0 0.0
        %398 = vmatpush1.msra.mxu0 0.0
        %399 = vmatprep.subr.mxu0 0.0
        %400 = vmatpush1.msra.mxu0 0.0
        %401 = vmatprep.subr.mxu0 0.0
        %402 = vmatpush1.msra.mxu0 0.0
        %403 = vmatprep.subr.mxu0 0.0
        %404 = vmatpush1.msra.mxu0 0.0
        %405 = vmatprep.subr.mxu0 0.0
        %406 = vmatpush1.msra.mxu0 0.0
        %407 = vmatprep.subr.mxu0 0.0
        %408 = vmatpush1.msra.mxu0 0.0
        %409 = vmatprep.subr.mxu0 0.0
        %410 = vmatpush1.msra.mxu0 0.0
        %411 = vmatprep.subr.mxu0 0.0
        %412 = vmatpush1.msra.mxu0 0.0
        %413 = vmatprep.subr.mxu0 0.0
        %414 = vmatpush1.msra.mxu0 0.0
        %415 = vmatprep.mubr.f32.mxu0 0.0
        %416 = vmatmul.mubr.f32.gmra.mrb[0].mxu0 %v312
        %v417 = vpop.f32.mrb[0].mxu0
        %v418 = vadd.f32 %v349, %v417
        %v419 = vpop.f32.mrb[0].mxu0
        %420 = vmatprep.mubr.f32.mxu0 0.0
        %421 = vmatmul.mubr.f32.gmra.mrb[0].mxu0 %v313
        %v422 = vpop.f32.mrb[0].mxu0
        %v423 = vadd.f32 %v349, %v422
        %v424 = vpop.f32.mrb[0].mxu0
        %425 = vmatprep.mubr.f32.mxu0 0.0
        %426 = vmatmul.mubr.f32.gmra.mrb[0].mxu0 %v314
        %v427 = vpop.f32.mrb[0].mxu0
        %v428 = vadd.f32 %v349, %v427
        %v429 = vpop.f32.mrb[0].mxu0
        %430 = vmatprep.mubr.f32.mxu0 0.0
        %431 = vmatmul.mubr.f32.gmra.mrb[0].mxu0 %v315
        %v432 = vpop.f32.mrb[0].mxu0
        %v433 = vadd.f32 %v349, %v432
        %v434 = vpop.f32.mrb[0].mxu0
        %435 = vmatprep.mubr.f32.mxu0 0.0
        %436 = vmatmul.mubr.f32.gmra.mrb[0].mxu0 %v316
        %v437 = vpop.f32.mrb[0].mxu0
        %v438 = vadd.f32 %v349, %v437
        %v439 = vpop.f32.mrb[0].mxu0
        %440 = vmatprep.mubr.f32.mxu0 0.0
        %441 = vmatmul.mubr.f32.gmra.mrb[0].mxu0 %v317
        %v442 = vpop.f32.mrb[0].mxu0
        %v443 = vadd.f32 %v349, %v442
        %v444 = vpop.f32.mrb[0].mxu0
        %445 = vmatprep.mubr.f32.mxu0 0.0
        %446 = vmatmul.mubr.f32.gmra.mrb[0].mxu0 %v318
        %v447 = vpop.f32.mrb[0].mxu0
        %v448 = vadd.f32 %v349, %v447
        %v449 = vpop.f32.mrb[0].mxu0
        %450 = vmatprep.mubr.f32.mxu0 0.0
        %451 = vmatmul.mubr.f32.gmra.mrb[0].mxu0 %v319
        %v452 = vpop.f32.mrb[0].mxu0
        %v453 = vadd.f32 %v349, %v452
        %v454 = vpop.f32.mrb[0].mxu0
        %455 = vmatprep.mubr.f32.mxu0 0.0
        %456 = vmatmul.mubr.f32.gmra.mrb[0].mxu0 %v320
        %v457 = vpop.f32.mrb[0].mxu0
        %v458 = vadd.f32 %v349, %v457
        %v459 = vpop.f32.mrb[0].mxu0
        %460 = vmatprep.mubr.f32.mxu0 0.0
        %461 = vmatmul.mubr.f32.gmra.mrb[0].mxu0 %v321
        %v462 = vpop.f32.mrb[0].mxu0
        %v463 = vadd.f32 %v349, %v462
        %v464 = vpop.f32.mrb[0].mxu0
        %465 = vmatprep.mubr.f32.mxu0 0.0
        %466 = vmatmul.mubr.f32.gmra.mrb[0].mxu0 %v322
        %v467 = vpop.f32.mrb[0].mxu0
        %v468 = vadd.f32 %v349, %v467
        %v469 = vpop.f32.mrb[0].mxu0
        %470 = vmatprep.mubr.f32.mxu0 0.0
        %471 = vmatmul.mubr.f32.gmra.mrb[0].mxu0 %v323
        %v472 = vpop.f32.mrb[0].mxu0
        %v473 = vadd.f32 %v349, %v472
        %v474 = vpop.f32.mrb[0].mxu0
        %475 = vmatprep.mubr.f32.mxu0 0.0
        %476 = vmatmul.mubr.f32.gmra.mrb[0].mxu0 %v324
        %v477 = vpop.f32.mrb[0].mxu0
        %v478 = vadd.f32 %v349, %v477
        %v479 = vpop.f32.mrb[0].mxu0
        %480 = vmatprep.mubr.f32.mxu0 0.0
        %481 = vmatmul.mubr.f32.gmra.mrb[0].mxu0 %v325
        %v482 = vpop.f32.mrb[0].mxu0
        %v483 = vadd.f32 %v349, %v482
        %v484 = vpop.f32.mrb[0].mxu0
        %485 = vmatprep.mubr.f32.mxu0 0.0
        %486 = vmatmul.mubr.f32.gmra.mrb[0].mxu0 %v326
        %v487 = vpop.f32.mrb[0].mxu0
        %v488 = vadd.f32 %v349, %v487
        %v489 = vpop.f32.mrb[0].mxu0
        %490 = vmatprep.mubr.f32.mxu0 0.0
        %491 = vmatmul.mubr.f32.gmra.mrb[0].mxu0 %v327
        %v492 = vpop.f32.mrb[0].mxu0
        %v493 = vadd.f32 %v349, %v492
        %v494 = vpop.f32.mrb[0].mxu0
        %495 = vdwg.mxu0
        %vm496 = vcmp.gt.f32.partialorder %v418, 0.0
        %vm497 = vcmp.gt.f32.partialorder %v423, 0.0
        %vm498 = vcmp.gt.f32.partialorder %v428, 0.0
        %vm499 = vcmp.gt.f32.partialorder %v433, 0.0
        %vm500 = vcmp.gt.f32.partialorder %v438, 0.0
        %vm501 = vcmp.gt.f32.partialorder %v443, 0.0
        %vm502 = vcmp.gt.f32.partialorder %v448, 0.0
        %vm503 = vcmp.gt.f32.partialorder %v453, 0.0
        %vm504 = vcmp.gt.f32.partialorder %v458, 0.0
        %vm505 = vcmp.gt.f32.partialorder %v463, 0.0
        %vm506 = vcmp.gt.f32.partialorder %v468, 0.0
        %vm507 = vcmp.gt.f32.partialorder %v473, 0.0
        %vm508 = vcmp.gt.f32.partialorder %v478, 0.0
        %vm509 = vcmp.gt.f32.partialorder %v483, 0.0
        %vm510 = vcmp.gt.f32.partialorder %v488, 0.0
        %vm511 = vcmp.gt.f32.partialorder %v493, 0.0
        %v512 = vmul.f32 %v418, 0.01
        %v513 = vmul.f32 %v423, 0.01
        %v514 = vmul.f32 %v428, 0.01
        %v515 = vmul.f32 %v433, 0.01
        %v516 = vmul.f32 %v438, 0.01
        %v517 = vmul.f32 %v443, 0.01
        %v518 = vmul.f32 %v448, 0.01
        %v519 = vmul.f32 %v453, 0.01
        %v520 = vmul.f32 %v458, 0.01
        %v521 = vmul.f32 %v463, 0.01
        %v522 = vmul.f32 %v468, 0.01
        %v523 = vmul.f32 %v473, 0.01
        %v524 = vmul.f32 %v478, 0.01
        %v525 = vmul.f32 %v483, 0.01
        %v526 = vmul.f32 %v488, 0.01
        %v527 = vmul.f32 %v493, 0.01
        %v528 = vsel %vm496, %v418, %v512
        %v529 = vsel %vm497, %v423, %v513
        %v530 = vsel %vm498, %v428, %v514
        %v531 = vsel %vm499, %v433, %v515
        %v532 = vsel %vm500, %v438, %v516
        %v533 = vsel %vm501, %v443, %v517
        %v534 = vsel %vm502, %v448, %v518
        %v535 = vsel %vm503, %v453, %v519
        %v536 = vsel %vm504, %v458, %v520
        %v537 = vsel %vm505, %v463, %v521
        %v538 = vsel %vm506, %v468, %v522
        %v539 = vsel %vm507, %v473, %v523
        %v540 = vsel %vm508, %v478, %v524
        %v541 = vsel %vm509, %v483, %v525
        %v542 = vsel %vm510, %v488, %v526
        %v543 = vsel %vm511, %v493, %v527
        %v544 = vld [vmem:[#allocation7 + $0x8] sm:$0xff]
        %v545 = vld [vmem:[#allocation7 + $0x50] sm:$0xff]
        %v546 = vld [vmem:[#allocation7 + $0x98] sm:$0xff]
        %v547 = vld [vmem:[#allocation7 + $0xe0] sm:$0xff]
        %v548 = vld [vmem:[#allocation7 + $0x128] sm:$0xff]
        %v549 = vld [vmem:[#allocation7 + $0x170] sm:$0xff]
        %v550 = vld [vmem:[#allocation7 + $0x1b8] sm:$0xff]
        %v551 = vld [vmem:[#allocation7 + $0x200] sm:$0xff]
        %v552 = vld [vmem:[#allocation7 + $0x248] sm:$0xff]
        %v553 = vld [vmem:[#allocation7 + $0x290] sm:$0xff]
        %v554 = vld [vmem:[#allocation7 + $0x2d8] sm:$0xff]
        %v555 = vld [vmem:[#allocation7 + $0x320] sm:$0xff]
        %v556 = vld [vmem:[#allocation7 + $0x368] sm:$0xff]
        %v557 = vld [vmem:[#allocation7 + $0x3b0] sm:$0xff]
        %v558 = vld [vmem:[#allocation7 + $0x3f8] sm:$0xff]
        %v559 = vld [vmem:[#allocation7 + $0x440] sm:$0xff]
        %v560 = vld [vmem:[%s3 + $0x1] sm:$0x1]
        %v562 = vlaneseq
        %v563 = vshrl.u32 %v562, 7
        %v564 = vsub.s32 0, %v563
        %v565 = vrot.slane %v560, %v564
        %567 = vmatprep.subr.mxu0 0.0
        %568 = vmatpush1.msra.mxu0 %v544
        %569 = vmatprep.subr.mxu0 0.0
        %570 = vmatpush1.msra.mxu0 %v545
        %571 = vmatprep.subr.mxu0 0.0
        %572 = vmatpush1.msra.mxu0 %v546
        %573 = vmatprep.subr.mxu0 0.0
        %574 = vmatpush1.msra.mxu0 %v547
        %575 = vmatprep.subr.mxu0 0.0
        %576 = vmatpush1.msra.mxu0 %v548
        %577 = vmatprep.subr.mxu0 0.0
        %578 = vmatpush1.msra.mxu0 %v549
        %579 = vmatprep.subr.mxu0 0.0
        %580 = vmatpush1.msra.mxu0 %v550
        %581 = vmatprep.subr.mxu0 0.0
        %582 = vmatpush1.msra.mxu0 %v551
        %583 = vmatprep.subr.mxu0 0.0
        %584 = vmatpush1.msra.mxu0 %v552
        %585 = vmatprep.subr.mxu0 0.0
        %586 = vmatpush1.msra.mxu0 %v553
        %587 = vmatprep.subr.mxu0 0.0
        %588 = vmatpush1.msra.mxu0 %v554
        %589 = vmatprep.subr.mxu0 0.0
        %590 = vmatpush1.msra.mxu0 %v555
        %591 = vmatprep.subr.mxu0 0.0
        %592 = vmatpush1.msra.mxu0 %v556
        %593 = vmatprep.subr.mxu0 0.0
        %594 = vmatpush1.msra.mxu0 %v557
        %595 = vmatprep.subr.mxu0 0.0
        %596 = vmatpush1.msra.mxu0 %v558
        %597 = vmatprep.subr.mxu0 0.0
        %598 = vmatpush1.msra.mxu0 %v559
        %599 = vmatprep.subr.mxu0 0.0
        %600 = vmatpush1.msra.mxu0 0.0
        %601 = vmatprep.subr.mxu0 0.0
        %602 = vmatpush1.msra.mxu0 0.0
        %603 = vmatprep.subr.mxu0 0.0
        %604 = vmatpush1.msra.mxu0 0.0
        %605 = vmatprep.subr.mxu0 0.0
        %606 = vmatpush1.msra.mxu0 0.0
        %607 = vmatprep.subr.mxu0 0.0
        %608 = vmatpush1.msra.mxu0 0.0
        %609 = vmatprep.subr.mxu0 0.0
        %610 = vmatpush1.msra.mxu0 0.0
        %611 = vmatprep.subr.mxu0 0.0
        %612 = vmatpush1.msra.mxu0 0.0
        %613 = vmatprep.subr.mxu0 0.0
        %614 = vmatpush1.msra.mxu0 0.0
        %615 = vmatprep.subr.mxu0 0.0
        %616 = vmatpush1.msra.mxu0 0.0
        %617 = vmatprep.subr.mxu0 0.0
        %618 = vmatpush1.msra.mxu0 0.0
        %619 = vmatprep.subr.mxu0 0.0
        %620 = vmatpush1.msra.mxu0 0.0
        %621 = vmatprep.subr.mxu0 0.0
        %622 = vmatpush1.msra.mxu0 0.0
        %623 = vmatprep.subr.mxu0 0.0
        %624 = vmatpush1.msra.mxu0 0.0
        %625 = vmatprep.subr.mxu0 0.0
        %626 = vmatpush1.msra.mxu0 0.0
        %627 = vmatprep.subr.mxu0 0.0
        %628 = vmatpush1.msra.mxu0 0.0
        %629 = vmatprep.subr.mxu0 0.0
        %630 = vmatpush1.msra.mxu0 0.0
        %631 = vmatprep.mubr.f32.mxu0 0.0
        %632 = vmatmul.mubr.f32.gmra.mrb[0].mxu0 %v528
        %v633 = vpop.f32.mrb[0].mxu0
        %v634 = vadd.f32 %v565, %v633
        %v635 = vpop.f32.mrb[0].mxu0
        %636 = vmatprep.mubr.f32.mxu0 0.0
        %637 = vmatmul.mubr.f32.gmra.mrb[0].mxu0 %v529
        %v638 = vpop.f32.mrb[0].mxu0
        %v639 = vadd.f32 %v565, %v638
        %v640 = vpop.f32.mrb[0].mxu0
        %641 = vmatprep.mubr.f32.mxu0 0.0
        %642 = vmatmul.mubr.f32.gmra.mrb[0].mxu0 %v530
        %v643 = vpop.f32.mrb[0].mxu0
        %v644 = vadd.f32 %v565, %v643
        %v645 = vpop.f32.mrb[0].mxu0
        %646 = vmatprep.mubr.f32.mxu0 0.0
        %647 = vmatmul.mubr.f32.gmra.mrb[0].mxu0 %v531
        %v648 = vpop.f32.mrb[0].mxu0
        %v649 = vadd.f32 %v565, %v648
        %v650 = vpop.f32.mrb[0].mxu0
        %651 = vmatprep.mubr.f32.mxu0 0.0
        %652 = vmatmul.mubr.f32.gmra.mrb[0].mxu0 %v532
        %v653 = vpop.f32.mrb[0].mxu0
        %v654 = vadd.f32 %v565, %v653
        %v655 = vpop.f32.mrb[0].mxu0
        %656 = vmatprep.mubr.f32.mxu0 0.0
        %657 = vmatmul.mubr.f32.gmra.mrb[0].mxu0 %v533
        %v658 = vpop.f32.mrb[0].mxu0
        %v659 = vadd.f32 %v565, %v658
        %v660 = vpop.f32.mrb[0].mxu0
        %661 = vmatprep.mubr.f32.mxu0 0.0
        %662 = vmatmul.mubr.f32.gmra.mrb[0].mxu0 %v534
        %v663 = vpop.f32.mrb[0].mxu0
        %v664 = vadd.f32 %v565, %v663
        %v665 = vpop.f32.mrb[0].mxu0
        %666 = vmatprep.mubr.f32.mxu0 0.0
        %667 = vmatmul.mubr.f32.gmra.mrb[0].mxu0 %v535
        %v668 = vpop.f32.mrb[0].mxu0
        %v669 = vadd.f32 %v565, %v668
        %v670 = vpop.f32.mrb[0].mxu0
        %671 = vmatprep.mubr.f32.mxu0 0.0
        %672 = vmatmul.mubr.f32.gmra.mrb[0].mxu0 %v536
        %v673 = vpop.f32.mrb[0].mxu0
        %v674 = vadd.f32 %v565, %v673
        %v675 = vpop.f32.mrb[0].mxu0
        %676 = vmatprep.mubr.f32.mxu0 0.0
        %677 = vmatmul.mubr.f32.gmra.mrb[0].mxu0 %v537
        %v678 = vpop.f32.mrb[0].mxu0
        %v679 = vadd.f32 %v565, %v678
        %v680 = vpop.f32.mrb[0].mxu0
        %681 = vmatprep.mubr.f32.mxu0 0.0
        %682 = vmatmul.mubr.f32.gmra.mrb[0].mxu0 %v538
        %v683 = vpop.f32.mrb[0].mxu0
        %v684 = vadd.f32 %v565, %v683
        %v685 = vpop.f32.mrb[0].mxu0
        %686 = vmatprep.mubr.f32.mxu0 0.0
        %687 = vmatmul.mubr.f32.gmra.mrb[0].mxu0 %v539
        %v688 = vpop.f32.mrb[0].mxu0
        %v689 = vadd.f32 %v565, %v688
        %v690 = vpop.f32.mrb[0].mxu0
        %691 = vmatprep.mubr.f32.mxu0 0.0
        %692 = vmatmul.mubr.f32.gmra.mrb[0].mxu0 %v540
        %v693 = vpop.f32.mrb[0].mxu0
        %v694 = vadd.f32 %v565, %v693
        %v695 = vpop.f32.mrb[0].mxu0
        %696 = vmatprep.mubr.f32.mxu0 0.0
        %697 = vmatmul.mubr.f32.gmra.mrb[0].mxu0 %v541
        %v698 = vpop.f32.mrb[0].mxu0
        %v699 = vadd.f32 %v565, %v698
        %v700 = vpop.f32.mrb[0].mxu0
        %701 = vmatprep.mubr.f32.mxu0 0.0
        %702 = vmatmul.mubr.f32.gmra.mrb[0].mxu0 %v542
        %v703 = vpop.f32.mrb[0].mxu0
        %v704 = vadd.f32 %v565, %v703
        %v705 = vpop.f32.mrb[0].mxu0
        %706 = vmatprep.mubr.f32.mxu0 0.0
        %707 = vmatmul.mubr.f32.gmra.mrb[0].mxu0 %v543
        %v708 = vpop.f32.mrb[0].mxu0
        %v709 = vadd.f32 %v565, %v708
        %v710 = vpop.f32.mrb[0].mxu0
        %711 = vdwg.mxu0
        %vm712 = vcmp.gt.f32.partialorder %v634, 0.0
        %vm713 = vcmp.gt.f32.partialorder %v639, 0.0
        %vm714 = vcmp.gt.f32.partialorder %v644, 0.0
        %vm715 = vcmp.gt.f32.partialorder %v649, 0.0
        %vm716 = vcmp.gt.f32.partialorder %v654, 0.0
        %vm717 = vcmp.gt.f32.partialorder %v659, 0.0
        %vm718 = vcmp.gt.f32.partialorder %v664, 0.0
        %vm719 = vcmp.gt.f32.partialorder %v669, 0.0
        %vm720 = vcmp.gt.f32.partialorder %v674, 0.0
        %vm721 = vcmp.gt.f32.partialorder %v679, 0.0
        %vm722 = vcmp.gt.f32.partialorder %v684, 0.0
        %vm723 = vcmp.gt.f32.partialorder %v689, 0.0
        %vm724 = vcmp.gt.f32.partialorder %v694, 0.0
        %vm725 = vcmp.gt.f32.partialorder %v699, 0.0
        %vm726 = vcmp.gt.f32.partialorder %v704, 0.0
        %vm727 = vcmp.gt.f32.partialorder %v709, 0.0
        %v728 = vmul.f32 %v634, 0.01
        %v729 = vmul.f32 %v639, 0.01
        %v730 = vmul.f32 %v644, 0.01
        %v731 = vmul.f32 %v649, 0.01
        %v732 = vmul.f32 %v654, 0.01
        %v733 = vmul.f32 %v659, 0.01
        %v734 = vmul.f32 %v664, 0.01
        %v735 = vmul.f32 %v669, 0.01
        %v736 = vmul.f32 %v674, 0.01
        %v737 = vmul.f32 %v679, 0.01
        %v738 = vmul.f32 %v684, 0.01
        %v739 = vmul.f32 %v689, 0.01
        %v740 = vmul.f32 %v694, 0.01
        %v741 = vmul.f32 %v699, 0.01
        %v742 = vmul.f32 %v704, 0.01
        %v743 = vmul.f32 %v709, 0.01
        %v744 = vsel %vm712, %v634, %v728
        %v745 = vsel %vm713, %v639, %v729
        %v746 = vsel %vm714, %v644, %v730
        %v747 = vsel %vm715, %v649, %v731
        %v748 = vsel %vm716, %v654, %v732
        %v749 = vsel %vm717, %v659, %v733
        %v750 = vsel %vm718, %v664, %v734
        %v751 = vsel %vm719, %v669, %v735
        %v752 = vsel %vm720, %v674, %v736
        %v753 = vsel %vm721, %v679, %v737
        %v754 = vsel %vm722, %v684, %v738
        %v755 = vsel %vm723, %v689, %v739
        %v756 = vsel %vm724, %v694, %v740
        %v757 = vsel %vm725, %v699, %v741
        %v758 = vsel %vm726, %v704, %v742
        %v759 = vsel %vm727, %v709, %v743
        %v760 = vld [vmem:[#allocation7 + $0x10] sm:$0xff]
        %v761 = vld [vmem:[#allocation7 + $0x58] sm:$0xff]
        %v762 = vld [vmem:[#allocation7 + $0xa0] sm:$0xff]
        %v763 = vld [vmem:[#allocation7 + $0xe8] sm:$0xff]
        %v764 = vld [vmem:[#allocation7 + $0x130] sm:$0xff]
        %v765 = vld [vmem:[#allocation7 + $0x178] sm:$0xff]
        %v766 = vld [vmem:[#allocation7 + $0x1c0] sm:$0xff]
        %v767 = vld [vmem:[#allocation7 + $0x208] sm:$0xff]
        %v768 = vld [vmem:[#allocation7 + $0x250] sm:$0xff]
        %v769 = vld [vmem:[#allocation7 + $0x298] sm:$0xff]
        %v770 = vld [vmem:[#allocation7 + $0x2e0] sm:$0xff]
        %v771 = vld [vmem:[#allocation7 + $0x328] sm:$0xff]
        %v772 = vld [vmem:[#allocation7 + $0x370] sm:$0xff]
        %v773 = vld [vmem:[#allocation7 + $0x3b8] sm:$0xff]
        %v774 = vld [vmem:[#allocation7 + $0x400] sm:$0xff]
        %v775 = vld [vmem:[#allocation7 + $0x448] sm:$0xff]
        %v776 = vld [vmem:[%s3 + $0x2] sm:$0x1]
        %v778 = vlaneseq
        %v779 = vshrl.u32 %v778, 7
        %v780 = vsub.s32 0, %v779
        %v781 = vrot.slane %v776, %v780
        %783 = vmatprep.subr.mxu0 0.0
        %784 = vmatpush1.msra.mxu0 %v760
        %785 = vmatprep.subr.mxu0 0.0
        %786 = vmatpush1.msra.mxu0 %v761
        %787 = vmatprep.subr.mxu0 0.0
        %788 = vmatpush1.msra.mxu0 %v762
        %789 = vmatprep.subr.mxu0 0.0
        %790 = vmatpush1.msra.mxu0 %v763
        %791 = vmatprep.subr.mxu0 0.0
        %792 = vmatpush1.msra.mxu0 %v764
        %793 = vmatprep.subr.mxu0 0.0
        %794 = vmatpush1.msra.mxu0 %v765
        %795 = vmatprep.subr.mxu0 0.0
        %796 = vmatpush1.msra.mxu0 %v766
        %797 = vmatprep.subr.mxu0 0.0
        %798 = vmatpush1.msra.mxu0 %v767
        %799 = vmatprep.subr.mxu0 0.0
        %800 = vmatpush1.msra.mxu0 %v768
        %801 = vmatprep.subr.mxu0 0.0
        %802 = vmatpush1.msra.mxu0 %v769
        %803 = vmatprep.subr.mxu0 0.0
        %804 = vmatpush1.msra.mxu0 %v770
        %805 = vmatprep.subr.mxu0 0.0
        %806 = vmatpush1.msra.mxu0 %v771
        %807 = vmatprep.subr.mxu0 0.0
        %808 = vmatpush1.msra.mxu0 %v772
        %809 = vmatprep.subr.mxu0 0.0
        %810 = vmatpush1.msra.mxu0 %v773
        %811 = vmatprep.subr.mxu0 0.0
        %812 = vmatpush1.msra.mxu0 %v774
        %813 = vmatprep.subr.mxu0 0.0
        %814 = vmatpush1.msra.mxu0 %v775
        %815 = vmatprep.subr.mxu0 0.0
        %816 = vmatpush1.msra.mxu0 0.0
        %817 = vmatprep.subr.mxu0 0.0
        %818 = vmatpush1.msra.mxu0 0.0
        %819 = vmatprep.subr.mxu0 0.0
        %820 = vmatpush1.msra.mxu0 0.0
        %821 = vmatprep.subr.mxu0 0.0
        %822 = vmatpush1.msra.mxu0 0.0
        %823 = vmatprep.subr.mxu0 0.0
        %824 = vmatpush1.msra.mxu0 0.0
        %825 = vmatprep.subr.mxu0 0.0
        %826 = vmatpush1.msra.mxu0 0.0
        %827 = vmatprep.subr.mxu0 0.0
        %828 = vmatpush1.msra.mxu0 0.0
        %829 = vmatprep.subr.mxu0 0.0
        %830 = vmatpush1.msra.mxu0 0.0
        %831 = vmatprep.subr.mxu0 0.0
        %832 = vmatpush1.msra.mxu0 0.0
        %833 = vmatprep.subr.mxu0 0.0
        %834 = vmatpush1.msra.mxu0 0.0
        %835 = vmatprep.subr.mxu0 0.0
        %836 = vmatpush1.msra.mxu0 0.0
        %837 = vmatprep.subr.mxu0 0.0
        %838 = vmatpush1.msra.mxu0 0.0
        %839 = vmatprep.subr.mxu0 0.0
        %840 = vmatpush1.msra.mxu0 0.0
        %841 = vmatprep.subr.mxu0 0.0
        %842 = vmatpush1.msra.mxu0 0.0
        %843 = vmatprep.subr.mxu0 0.0
        %844 = vmatpush1.msra.mxu0 0.0
        %845 = vmatprep.subr.mxu0 0.0
        %846 = vmatpush1.msra.mxu0 0.0
        %847 = vmatprep.mubr.f32.mxu0 0.0
        %848 = vmatmul.mubr.f32.gmra.mrb[0].mxu0 %v744
        %v849 = vpop.f32.mrb[0].mxu0
        %v850 = vadd.f32 %v781, %v849
        %v851 = vpop.f32.mrb[0].mxu0
        %852 = vmatprep.mubr.f32.mxu0 0.0
        %853 = vmatmul.mubr.f32.gmra.mrb[0].mxu0 %v745
        %v854 = vpop.f32.mrb[0].mxu0
        %v855 = vadd.f32 %v781, %v854
        %v856 = vpop.f32.mrb[0].mxu0
        %857 = vmatprep.mubr.f32.mxu0 0.0
        %858 = vmatmul.mubr.f32.gmra.mrb[0].mxu0 %v746
        %v859 = vpop.f32.mrb[0].mxu0
        %v860 = vadd.f32 %v781, %v859
        %v861 = vpop.f32.mrb[0].mxu0
        %862 = vmatprep.mubr.f32.mxu0 0.0
        %863 = vmatmul.mubr.f32.gmra.mrb[0].mxu0 %v747
        %v864 = vpop.f32.mrb[0].mxu0
        %v865 = vadd.f32 %v781, %v864
        %v866 = vpop.f32.mrb[0].mxu0
        %867 = vmatprep.mubr.f32.mxu0 0.0
        %868 = vmatmul.mubr.f32.gmra.mrb[0].mxu0 %v748
        %v869 = vpop.f32.mrb[0].mxu0
        %v870 = vadd.f32 %v781, %v869
        %v871 = vpop.f32.mrb[0].mxu0
        %872 = vmatprep.mubr.f32.mxu0 0.0
        %873 = vmatmul.mubr.f32.gmra.mrb[0].mxu0 %v749
        %v874 = vpop.f32.mrb[0].mxu0
        %v875 = vadd.f32 %v781, %v874
        %v876 = vpop.f32.mrb[0].mxu0
        %877 = vmatprep.mubr.f32.mxu0 0.0
        %878 = vmatmul.mubr.f32.gmra.mrb[0].mxu0 %v750
        %v879 = vpop.f32.mrb[0].mxu0
        %v880 = vadd.f32 %v781, %v879
        %v881 = vpop.f32.mrb[0].mxu0
        %882 = vmatprep.mubr.f32.mxu0 0.0
        %883 = vmatmul.mubr.f32.gmra.mrb[0].mxu0 %v751
        %v884 = vpop.f32.mrb[0].mxu0
        %v885 = vadd.f32 %v781, %v884
        %v886 = vpop.f32.mrb[0].mxu0
        %887 = vmatprep.mubr.f32.mxu0 0.0
        %888 = vmatmul.mubr.f32.gmra.mrb[0].mxu0 %v752
        %v889 = vpop.f32.mrb[0].mxu0
        %v890 = vadd.f32 %v781, %v889
        %v891 = vpop.f32.mrb[0].mxu0
        %892 = vmatprep.mubr.f32.mxu0 0.0
        %893 = vmatmul.mubr.f32.gmra.mrb[0].mxu0 %v753
        %v894 = vpop.f32.mrb[0].mxu0
        %v895 = vadd.f32 %v781, %v894
        %v896 = vpop.f32.mrb[0].mxu0
        %897 = vmatprep.mubr.f32.mxu0 0.0
        %898 = vmatmul.mubr.f32.gmra.mrb[0].mxu0 %v754
        %v899 = vpop.f32.mrb[0].mxu0
        %v900 = vadd.f32 %v781, %v899
        %v901 = vpop.f32.mrb[0].mxu0
        %902 = vmatprep.mubr.f32.mxu0 0.0
        %903 = vmatmul.mubr.f32.gmra.mrb[0].mxu0 %v755
        %v904 = vpop.f32.mrb[0].mxu0
        %v905 = vadd.f32 %v781, %v904
        %v906 = vpop.f32.mrb[0].mxu0
        %907 = vmatprep.mubr.f32.mxu0 0.0
        %908 = vmatmul.mubr.f32.gmra.mrb[0].mxu0 %v756
        %v909 = vpop.f32.mrb[0].mxu0
        %v910 = vadd.f32 %v781, %v909
        %v911 = vpop.f32.mrb[0].mxu0
        %912 = vmatprep.mubr.f32.mxu0 0.0
        %913 = vmatmul.mubr.f32.gmra.mrb[0].mxu0 %v757
        %v914 = vpop.f32.mrb[0].mxu0
        %v915 = vadd.f32 %v781, %v914
        %v916 = vpop.f32.mrb[0].mxu0
        %917 = vmatprep.mubr.f32.mxu0 0.0
        %918 = vmatmul.mubr.f32.gmra.mrb[0].mxu0 %v758
        %v919 = vpop.f32.mrb[0].mxu0
        %v920 = vadd.f32 %v781, %v919
        %v921 = vpop.f32.mrb[0].mxu0
        %922 = vmatprep.mubr.f32.mxu0 0.0
        %923 = vmatmul.mubr.f32.gmra.mrb[0].mxu0 %v759
        %v924 = vpop.f32.mrb[0].mxu0
        %v925 = vadd.f32 %v781, %v924
        %v926 = vpop.f32.mrb[0].mxu0
        %927 = vdwg.mxu0
        %vm928 = vcmp.gt.f32.partialorder %v850, 0.0
        %vm929 = vcmp.gt.f32.partialorder %v855, 0.0
        %vm930 = vcmp.gt.f32.partialorder %v860, 0.0
        %vm931 = vcmp.gt.f32.partialorder %v865, 0.0
        %vm932 = vcmp.gt.f32.partialorder %v870, 0.0
        %vm933 = vcmp.gt.f32.partialorder %v875, 0.0
        %vm934 = vcmp.gt.f32.partialorder %v880, 0.0
        %vm935 = vcmp.gt.f32.partialorder %v885, 0.0
        %vm936 = vcmp.gt.f32.partialorder %v890, 0.0
        %vm937 = vcmp.gt.f32.partialorder %v895, 0.0
        %vm938 = vcmp.gt.f32.partialorder %v900, 0.0
        %vm939 = vcmp.gt.f32.partialorder %v905, 0.0
        %vm940 = vcmp.gt.f32.partialorder %v910, 0.0
        %vm941 = vcmp.gt.f32.partialorder %v915, 0.0
        %vm942 = vcmp.gt.f32.partialorder %v920, 0.0
        %vm943 = vcmp.gt.f32.partialorder %v925, 0.0
        %v944 = vmul.f32 %v850, 0.01
        %v945 = vmul.f32 %v855, 0.01
        %v946 = vmul.f32 %v860, 0.01
        %v947 = vmul.f32 %v865, 0.01
        %v948 = vmul.f32 %v870, 0.01
        %v949 = vmul.f32 %v875, 0.01
        %v950 = vmul.f32 %v880, 0.01
        %v951 = vmul.f32 %v885, 0.01
        %v952 = vmul.f32 %v890, 0.01
        %v953 = vmul.f32 %v895, 0.01
        %v954 = vmul.f32 %v900, 0.01
        %v955 = vmul.f32 %v905, 0.01
        %v956 = vmul.f32 %v910, 0.01
        %v957 = vmul.f32 %v915, 0.01
        %v958 = vmul.f32 %v920, 0.01
        %v959 = vmul.f32 %v925, 0.01
        %v960 = vsel %vm928, %v850, %v944
        %v961 = vsel %vm929, %v855, %v945
        %v962 = vsel %vm930, %v860, %v946
        %v963 = vsel %vm931, %v865, %v947
        %v964 = vsel %vm932, %v870, %v948
        %v965 = vsel %vm933, %v875, %v949
        %v966 = vsel %vm934, %v880, %v950
        %v967 = vsel %vm935, %v885, %v951
        %v968 = vsel %vm936, %v890, %v952
        %v969 = vsel %vm937, %v895, %v953
        %v970 = vsel %vm938, %v900, %v954
        %v971 = vsel %vm939, %v905, %v955
        %v972 = vsel %vm940, %v910, %v956
        %v973 = vsel %vm941, %v915, %v957
        %v974 = vsel %vm942, %v920, %v958
        %v975 = vsel %vm943, %v925, %v959
        %v976 = vld [vmem:[#allocation7 + $0x18] sm:$0xff]
        %v977 = vld [vmem:[#allocation7 + $0x20] sm:$0xff]
        %v978 = vld [vmem:[#allocation7 + $0x60] sm:$0xff]
        %v979 = vld [vmem:[#allocation7 + $0x68] sm:$0xff]
        %v980 = vld [vmem:[#allocation7 + $0xa8] sm:$0xff]
        %v981 = vld [vmem:[#allocation7 + $0xb0] sm:$0xff]
        %v982 = vld [vmem:[#allocation7 + $0xf0] sm:$0xff]
        %v983 = vld [vmem:[#allocation7 + $0xf8] sm:$0xff]
        %v984 = vld [vmem:[#allocation7 + $0x138] sm:$0xff]
        %v985 = vld [vmem:[#allocation7 + $0x140] sm:$0xff]
        %v986 = vld [vmem:[#allocation7 + $0x180] sm:$0xff]
        %v987 = vld [vmem:[#allocation7 + $0x188] sm:$0xff]
        %v988 = vld [vmem:[#allocation7 + $0x1c8] sm:$0xff]
        %v989 = vld [vmem:[#allocation7 + $0x1d0] sm:$0xff]
        %v990 = vld [vmem:[#allocation7 + $0x210] sm:$0xff]
        %v991 = vld [vmem:[#allocation7 + $0x218] sm:$0xff]
        %v992 = vld [vmem:[#allocation7 + $0x258] sm:$0xff]
        %v993 = vld [vmem:[#allocation7 + $0x260] sm:$0xff]
        %v994 = vld [vmem:[#allocation7 + $0x2a0] sm:$0xff]
        %v995 = vld [vmem:[#allocation7 + $0x2a8] sm:$0xff]
        %v996 = vld [vmem:[#allocation7 + $0x2e8] sm:$0xff]
        %v997 = vld [vmem:[#allocation7 + $0x2f0] sm:$0xff]
        %v998 = vld [vmem:[#allocation7 + $0x330] sm:$0xff]
        %v999 = vld [vmem:[#allocation7 + $0x338] sm:$0xff]
        %v1000 = vld [vmem:[#allocation7 + $0x378] sm:$0xff]
        %v1001 = vld [vmem:[#allocation7 + $0x380] sm:$0xff]
        %v1002 = vld [vmem:[#allocation7 + $0x3c0] sm:$0xff]
        %v1003 = vld [vmem:[#allocation7 + $0x3c8] sm:$0xff]
        %v1004 = vld [vmem:[#allocation7 + $0x408] sm:$0xff]
        %v1005 = vld [vmem:[#allocation7 + $0x410] sm:$0xff]
        %v1006 = vld [vmem:[#allocation7 + $0x450] sm:$0xff]
        %v1007 = vld [vmem:[#allocation7 + $0x458] sm:$0xff]
        %v1008 = vld [vmem:[%s3 + $0x3] sm:$0x3]
        %v1010 = vlaneseq
        %v1011 = vshrl.u32 %v1010, 7
        %v1012 = vsub.s32 0, %v1011
        %v1013 = vrot.slane %v1008, %v1012
        %v1014 = vlaneseq
        %v1015 = vshrl.u32 %v1014, 7
        %v1016 = vsub.s32 1, %v1015
        %v1017 = vrot.slane %v1008, %v1016
        %1020 = vmatprep.subr.mxu0 %v977
        %1021 = vmatpush1.msra.mxu0 %v976
        %1022 = vmatprep.subr.mxu0 %v979
        %1023 = vmatpush1.msra.mxu0 %v978
        %1024 = vmatprep.subr.mxu0 %v981
        %1025 = vmatpush1.msra.mxu0 %v980
        %1026 = vmatprep.subr.mxu0 %v983
        %1027 = vmatpush1.msra.mxu0 %v982
        %1028 = vmatprep.subr.mxu0 %v985
        %1029 = vmatpush1.msra.mxu0 %v984
        %1030 = vmatprep.subr.mxu0 %v987
        %1031 = vmatpush1.msra.mxu0 %v986
        %1032 = vmatprep.subr.mxu0 %v989
        %1033 = vmatpush1.msra.mxu0 %v988
        %1034 = vmatprep.subr.mxu0 %v991
        %1035 = vmatpush1.msra.mxu0 %v990
        %1036 = vmatprep.subr.mxu0 %v993
        %1037 = vmatpush1.msra.mxu0 %v992
        %1038 = vmatprep.subr.mxu0 %v995
        %1039 = vmatpush1.msra.mxu0 %v994
        %1040 = vmatprep.subr.mxu0 %v997
        %1041 = vmatpush1.msra.mxu0 %v996
        %1042 = vmatprep.subr.mxu0 %v999
        %1043 = vmatpush1.msra.mxu0 %v998
        %1044 = vmatprep.subr.mxu0 %v1001
        %1045 = vmatpush1.msra.mxu0 %v1000
        %1046 = vmatprep.subr.mxu0 %v1003
        %1047 = vmatpush1.msra.mxu0 %v1002
        %1048 = vmatprep.subr.mxu0 %v1005
        %1049 = vmatpush1.msra.mxu0 %v1004
        %1050 = vmatprep.subr.mxu0 %v1007
        %1051 = vmatpush1.msra.mxu0 %v1006
        %1052 = vmatprep.subr.mxu0 0.0
        %1053 = vmatpush1.msra.mxu0 0.0
        %1054 = vmatprep.subr.mxu0 0.0
        %1055 = vmatpush1.msra.mxu0 0.0
        %1056 = vmatprep.subr.mxu0 0.0
        %1057 = vmatpush1.msra.mxu0 0.0
        %1058 = vmatprep.subr.mxu0 0.0
        %1059 = vmatpush1.msra.mxu0 0.0
        %1060 = vmatprep.subr.mxu0 0.0
        %1061 = vmatpush1.msra.mxu0 0.0
        %1062 = vmatprep.subr.mxu0 0.0
        %1063 = vmatpush1.msra.mxu0 0.0
        %1064 = vmatprep.subr.mxu0 0.0
        %1065 = vmatpush1.msra.mxu0 0.0
        %1066 = vmatprep.subr.mxu0 0.0
        %1067 = vmatpush1.msra.mxu0 0.0
        %1068 = vmatprep.subr.mxu0 0.0
        %1069 = vmatpush1.msra.mxu0 0.0
        %1070 = vmatprep.subr.mxu0 0.0
        %1071 = vmatpush1.msra.mxu0 0.0
        %1072 = vmatprep.subr.mxu0 0.0
        %1073 = vmatpush1.msra.mxu0 0.0
        %1074 = vmatprep.subr.mxu0 0.0
        %1075 = vmatpush1.msra.mxu0 0.0
        %1076 = vmatprep.subr.mxu0 0.0
        %1077 = vmatpush1.msra.mxu0 0.0
        %1078 = vmatprep.subr.mxu0 0.0
        %1079 = vmatpush1.msra.mxu0 0.0
        %1080 = vmatprep.subr.mxu0 0.0
        %1081 = vmatpush1.msra.mxu0 0.0
        %1082 = vmatprep.subr.mxu0 0.0
        %1083 = vmatpush1.msra.mxu0 0.0
        %1084 = vmatprep.mubr.f32.mxu0 0.0
        %1085 = vmatmul.mubr.f32.gmra.mrb[0].mxu0 %v960
        %v1086 = vpop.f32.mrb[0].mxu0
        %v1087 = vadd.f32 %v1013, %v1086
        %v1088 = vpop.f32.mrb[0].mxu0
        %v1089 = vadd.f32 %v1017, %v1088
        %1090 = vmatprep.mubr.f32.mxu0 0.0
        %1091 = vmatmul.mubr.f32.gmra.mrb[0].mxu0 %v961
        %v1092 = vpop.f32.mrb[0].mxu0
        %v1093 = vadd.f32 %v1013, %v1092
        %v1094 = vpop.f32.mrb[0].mxu0
        %v1095 = vadd.f32 %v1017, %v1094
        %1096 = vmatprep.mubr.f32.mxu0 0.0
        %1097 = vmatmul.mubr.f32.gmra.mrb[0].mxu0 %v962
        %v1098 = vpop.f32.mrb[0].mxu0
        %v1099 = vadd.f32 %v1013, %v1098
        %v1100 = vpop.f32.mrb[0].mxu0
        %v1101 = vadd.f32 %v1017, %v1100
        %1102 = vmatprep.mubr.f32.mxu0 0.0
        %1103 = vmatmul.mubr.f32.gmra.mrb[0].mxu0 %v963
        %v1104 = vpop.f32.mrb[0].mxu0
        %v1105 = vadd.f32 %v1013, %v1104
        %v1106 = vpop.f32.mrb[0].mxu0
        %v1107 = vadd.f32 %v1017, %v1106
        %1108 = vmatprep.mubr.f32.mxu0 0.0
        %1109 = vmatmul.mubr.f32.gmra.mrb[0].mxu0 %v964
        %v1110 = vpop.f32.mrb[0].mxu0
        %v1111 = vadd.f32 %v1013, %v1110
        %v1112 = vpop.f32.mrb[0].mxu0
        %v1113 = vadd.f32 %v1017, %v1112
        %1114 = vmatprep.mubr.f32.mxu0 0.0
        %1115 = vmatmul.mubr.f32.gmra.mrb[0].mxu0 %v965
        %v1116 = vpop.f32.mrb[0].mxu0
        %v1117 = vadd.f32 %v1013, %v1116
        %v1118 = vpop.f32.mrb[0].mxu0
        %v1119 = vadd.f32 %v1017, %v1118
        %1120 = vmatprep.mubr.f32.mxu0 0.0
        %1121 = vmatmul.mubr.f32.gmra.mrb[0].mxu0 %v966
        %v1122 = vpop.f32.mrb[0].mxu0
        %v1123 = vadd.f32 %v1013, %v1122
        %v1124 = vpop.f32.mrb[0].mxu0
        %v1125 = vadd.f32 %v1017, %v1124
        %1126 = vmatprep.mubr.f32.mxu0 0.0
        %1127 = vmatmul.mubr.f32.gmra.mrb[0].mxu0 %v967
        %v1128 = vpop.f32.mrb[0].mxu0
        %v1129 = vadd.f32 %v1013, %v1128
        %v1130 = vpop.f32.mrb[0].mxu0
        %v1131 = vadd.f32 %v1017, %v1130
        %1132 = vmatprep.mubr.f32.mxu0 0.0
        %1133 = vmatmul.mubr.f32.gmra.mrb[0].mxu0 %v968
        %v1134 = vpop.f32.mrb[0].mxu0
        %v1135 = vadd.f32 %v1013, %v1134
        %v1136 = vpop.f32.mrb[0].mxu0
        %v1137 = vadd.f32 %v1017, %v1136
        %1138 = vmatprep.mubr.f32.mxu0 0.0
        %1139 = vmatmul.mubr.f32.gmra.mrb[0].mxu0 %v969
        %v1140 = vpop.f32.mrb[0].mxu0
        %v1141 = vadd.f32 %v1013, %v1140
        %v1142 = vpop.f32.mrb[0].mxu0
        %v1143 = vadd.f32 %v1017, %v1142
        %1144 = vmatprep.mubr.f32.mxu0 0.0
        %1145 = vmatmul.mubr.f32.gmra.mrb[0].mxu0 %v970
        %v1146 = vpop.f32.mrb[0].mxu0
        %v1147 = vadd.f32 %v1013, %v1146
        %v1148 = vpop.f32.mrb[0].mxu0
        %v1149 = vadd.f32 %v1017, %v1148
        %1150 = vmatprep.mubr.f32.mxu0 0.0
        %1151 = vmatmul.mubr.f32.gmra.mrb[0].mxu0 %v971
        %v1152 = vpop.f32.mrb[0].mxu0
        %v1153 = vadd.f32 %v1013, %v1152
        %v1154 = vpop.f32.mrb[0].mxu0
        %v1155 = vadd.f32 %v1017, %v1154
        %1156 = vmatprep.mubr.f32.mxu0 0.0
        %1157 = vmatmul.mubr.f32.gmra.mrb[0].mxu0 %v972
        %v1158 = vpop.f32.mrb[0].mxu0
        %v1159 = vadd.f32 %v1013, %v1158
        %v1160 = vpop.f32.mrb[0].mxu0
        %v1161 = vadd.f32 %v1017, %v1160
        %1162 = vmatprep.mubr.f32.mxu0 0.0
        %1163 = vmatmul.mubr.f32.gmra.mrb[0].mxu0 %v973
        %v1164 = vpop.f32.mrb[0].mxu0
        %v1165 = vadd.f32 %v1013, %v1164
        %v1166 = vpop.f32.mrb[0].mxu0
        %v1167 = vadd.f32 %v1017, %v1166
        %1168 = vmatprep.mubr.f32.mxu0 0.0
        %1169 = vmatmul.mubr.f32.gmra.mrb[0].mxu0 %v974
        %v1170 = vpop.f32.mrb[0].mxu0
        %v1171 = vadd.f32 %v1013, %v1170
        %v1172 = vpop.f32.mrb[0].mxu0
        %v1173 = vadd.f32 %v1017, %v1172
        %1174 = vmatprep.mubr.f32.mxu0 0.0
        %1175 = vmatmul.mubr.f32.gmra.mrb[0].mxu0 %v975
        %v1176 = vpop.f32.mrb[0].mxu0
        %v1177 = vadd.f32 %v1013, %v1176
        %v1178 = vpop.f32.mrb[0].mxu0
        %v1179 = vadd.f32 %v1017, %v1178
        %1180 = vdwg.mxu0
        %v1181 = vld [vmem:[%s267] sm:$0xff]
        %v1182 = vld [vmem:[%s267 + $0x8] sm:$0xff]
        %v1183 = vld [vmem:[%s267 + $0x10] sm:$0xff]
        %v1184 = vld [vmem:[%s267 + $0x18] sm:$0xff]
        %v1185 = vld [vmem:[%s267 + $0x20] sm:$0xff]
        %v1186 = vld [vmem:[%s267 + $0x28] sm:$0xff]
        %v1187 = vld [vmem:[%s267 + $0x30] sm:$0xff]
        %v1188 = vld [vmem:[%s267 + $0x38] sm:$0xff]
        %v1189 = vld [vmem:[%s267 + $0x40] sm:$0xff]
        %v1190 = vld [vmem:[%s267 + $0x48] sm:$0xff]
        %v1191 = vld [vmem:[%s267 + $0x50] sm:$0xff]
        %v1192 = vld [vmem:[%s267 + $0x58] sm:$0xff]
        %v1193 = vld [vmem:[%s267 + $0x60] sm:$0xff]
        %v1194 = vld [vmem:[%s267 + $0x68] sm:$0xff]
        %v1195 = vld [vmem:[%s267 + $0x70] sm:$0xff]
        %v1196 = vld [vmem:[%s267 + $0x78] sm:$0xff]
        %v1197 = vmul.f32 %v1089, 0.5
        %v1198 = vmul.f32 %v1095, 0.5
        %v1199 = vmul.f32 %v1101, 0.5
        %v1200 = vmul.f32 %v1107, 0.5
        %v1201 = vmul.f32 %v1113, 0.5
        %v1202 = vmul.f32 %v1119, 0.5
        %v1203 = vmul.f32 %v1125, 0.5
        %v1204 = vmul.f32 %v1131, 0.5
        %v1205 = vmul.f32 %v1137, 0.5
        %v1206 = vmul.f32 %v1143, 0.5
        %v1207 = vmul.f32 %v1149, 0.5
        %v1208 = vmul.f32 %v1155, 0.5
        %v1209 = vmul.f32 %v1161, 0.5
        %v1210 = vmul.f32 %v1167, 0.5
        %v1211 = vmul.f32 %v1173, 0.5
        %v1212 = vmul.f32 %v1179, 0.5
        %v1213 = vmul.f32 %v1197, 1.442695
        %v1214 = vpow.pop %v1213
        %v1215 = vmul.f32 %v1198, 1.442695
        %v1216 = vpow.pop %v1215
        %v1217 = vmul.f32 %v1199, 1.442695
        %v1218 = vpow.pop %v1217
        %v1219 = vmul.f32 %v1200, 1.442695
        %v1220 = vpow.pop %v1219
        %v1221 = vmul.f32 %v1201, 1.442695
        %v1222 = vpow.pop %v1221
        %v1223 = vmul.f32 %v1202, 1.442695
        %v1224 = vpow.pop %v1223
        %v1225 = vmul.f32 %v1203, 1.442695
        %v1226 = vpow.pop %v1225
        %v1227 = vmul.f32 %v1204, 1.442695
        %v1228 = vpow.pop %v1227
        %v1229 = vmul.f32 %v1205, 1.442695
        %v1230 = vpow.pop %v1229
        %v1231 = vmul.f32 %v1206, 1.442695
        %v1232 = vpow.pop %v1231
        %v1233 = vmul.f32 %v1207, 1.442695
        %v1234 = vpow.pop %v1233
        %v1235 = vmul.f32 %v1208, 1.442695
        %v1236 = vpow.pop %v1235
        %v1237 = vmul.f32 %v1209, 1.442695
        %v1238 = vpow.pop %v1237
        %v1239 = vmul.f32 %v1210, 1.442695
        %v1240 = vpow.pop %v1239
        %v1241 = vmul.f32 %v1211, 1.442695
        %v1242 = vpow.pop %v1241
        %v1243 = vmul.f32 %v1212, 1.442695
        %v1244 = vpow.pop %v1243
        %v1245 = vmul.f32 %v1181, %v1214
        %v1246 = vmul.f32 %v1182, %v1216
        %v1247 = vmul.f32 %v1183, %v1218
        %v1248 = vmul.f32 %v1184, %v1220
        %v1249 = vmul.f32 %v1185, %v1222
        %v1250 = vmul.f32 %v1186, %v1224
        %v1251 = vmul.f32 %v1187, %v1226
        %v1252 = vmul.f32 %v1188, %v1228
        %v1253 = vmul.f32 %v1189, %v1230
        %v1254 = vmul.f32 %v1190, %v1232
        %v1255 = vmul.f32 %v1191, %v1234
        %v1256 = vmul.f32 %v1192, %v1236
        %v1257 = vmul.f32 %v1193, %v1238
        %v1258 = vmul.f32 %v1194, %v1240
        %v1259 = vmul.f32 %v1195, %v1242
        %v1260 = vmul.f32 %v1196, %v1244
        %v1261 = vadd.f32 %v1245, %v1087
        %v1262 = vadd.f32 %v1246, %v1093
        %v1263 = vadd.f32 %v1247, %v1099
        %v1264 = vadd.f32 %v1248, %v1105
        %v1265 = vadd.f32 %v1249, %v1111
        %v1266 = vadd.f32 %v1250, %v1117
        %v1267 = vadd.f32 %v1251, %v1123
        %v1268 = vadd.f32 %v1252, %v1129
        %v1269 = vadd.f32 %v1253, %v1135
        %v1270 = vadd.f32 %v1254, %v1141
        %v1271 = vadd.f32 %v1255, %v1147
        %v1272 = vadd.f32 %v1256, %v1153
        %v1273 = vadd.f32 %v1257, %v1159
        %v1274 = vadd.f32 %v1258, %v1165
        %v1275 = vadd.f32 %v1259, %v1171
        %v1276 = vadd.f32 %v1260, %v1177
        %v1277 = vld [vmem:[#allocation7 + $0x28] sm:$0xff]
        %v1278 = vld [vmem:[#allocation7 + $0x70] sm:$0xff]
        %v1279 = vld [vmem:[#allocation7 + $0xb8] sm:$0xff]
        %v1280 = vld [vmem:[#allocation7 + $0x100] sm:$0xff]
        %v1281 = vld [vmem:[#allocation7 + $0x148] sm:$0xff]
        %v1282 = vld [vmem:[#allocation7 + $0x190] sm:$0xff]
        %v1283 = vld [vmem:[#allocation7 + $0x1d8] sm:$0xff]
        %v1284 = vld [vmem:[#allocation7 + $0x220] sm:$0xff]
        %v1285 = vld [vmem:[#allocation7 + $0x268] sm:$0xff]
        %v1286 = vld [vmem:[#allocation7 + $0x2b0] sm:$0xff]
        %v1287 = vld [vmem:[#allocation7 + $0x2f8] sm:$0xff]
        %v1288 = vld [vmem:[#allocation7 + $0x340] sm:$0xff]
        %v1289 = vld [vmem:[#allocation7 + $0x388] sm:$0xff]
        %v1290 = vld [vmem:[#allocation7 + $0x3d0] sm:$0xff]
        %v1291 = vld [vmem:[#allocation7 + $0x418] sm:$0xff]
        %v1292 = vld [vmem:[#allocation7 + $0x460] sm:$0xff]
        %v1293 = vld [vmem:[%s3 + $0x5] sm:$0x1]
        %v1295 = vlaneseq
        %v1296 = vshrl.u32 %v1295, 7
        %v1297 = vsub.s32 0, %v1296
        %v1298 = vrot.slane %v1293, %v1297
        %1300 = vmatprep.subr.mxu0 0.0
        %1301 = vmatpush1.msra.mxu0 %v1277
        %1302 = vmatprep.subr.mxu0 0.0
        %1303 = vmatpush1.msra.mxu0 %v1278
        %1304 = vmatprep.subr.mxu0 0.0
        %1305 = vmatpush1.msra.mxu0 %v1279
        %1306 = vmatprep.subr.mxu0 0.0
        %1307 = vmatpush1.msra.mxu0 %v1280
        %1308 = vmatprep.subr.mxu0 0.0
        %1309 = vmatpush1.msra.mxu0 %v1281
        %1310 = vmatprep.subr.mxu0 0.0
        %1311 = vmatpush1.msra.mxu0 %v1282
        %1312 = vmatprep.subr.mxu0 0.0
        %1313 = vmatpush1.msra.mxu0 %v1283
        %1314 = vmatprep.subr.mxu0 0.0
        %1315 = vmatpush1.msra.mxu0 %v1284
        %1316 = vmatprep.subr.mxu0 0.0
        %1317 = vmatpush1.msra.mxu0 %v1285
        %1318 = vmatprep.subr.mxu0 0.0
        %1319 = vmatpush1.msra.mxu0 %v1286
        %1320 = vmatprep.subr.mxu0 0.0
        %1321 = vmatpush1.msra.mxu0 %v1287
        %1322 = vmatprep.subr.mxu0 0.0
        %1323 = vmatpush1.msra.mxu0 %v1288
        %1324 = vmatprep.subr.mxu0 0.0
        %1325 = vmatpush1.msra.mxu0 %v1289
        %1326 = vmatprep.subr.mxu0 0.0
        %1327 = vmatpush1.msra.mxu0 %v1290
        %1328 = vmatprep.subr.mxu0 0.0
        %1329 = vmatpush1.msra.mxu0 %v1291
        %1330 = vmatprep.subr.mxu0 0.0
        %1331 = vmatpush1.msra.mxu0 %v1292
        %1332 = vmatprep.subr.mxu0 0.0
        %1333 = vmatpush1.msra.mxu0 0.0
        %1334 = vmatprep.subr.mxu0 0.0
        %1335 = vmatpush1.msra.mxu0 0.0
        %1336 = vmatprep.subr.mxu0 0.0
        %1337 = vmatpush1.msra.mxu0 0.0
        %1338 = vmatprep.subr.mxu0 0.0
        %1339 = vmatpush1.msra.mxu0 0.0
        %1340 = vmatprep.subr.mxu0 0.0
        %1341 = vmatpush1.msra.mxu0 0.0
        %1342 = vmatprep.subr.mxu0 0.0
        %1343 = vmatpush1.msra.mxu0 0.0
        %1344 = vmatprep.subr.mxu0 0.0
        %1345 = vmatpush1.msra.mxu0 0.0
        %1346 = vmatprep.subr.mxu0 0.0
        %1347 = vmatpush1.msra.mxu0 0.0
        %1348 = vmatprep.subr.mxu0 0.0
        %1349 = vmatpush1.msra.mxu0 0.0
        %1350 = vmatprep.subr.mxu0 0.0
        %1351 = vmatpush1.msra.mxu0 0.0
        %1352 = vmatprep.subr.mxu0 0.0
        %1353 = vmatpush1.msra.mxu0 0.0
        %1354 = vmatprep.subr.mxu0 0.0
        %1355 = vmatpush1.msra.mxu0 0.0
        %1356 = vmatprep.subr.mxu0 0.0
        %1357 = vmatpush1.msra.mxu0 0.0
        %1358 = vmatprep.subr.mxu0 0.0
        %1359 = vmatpush1.msra.mxu0 0.0
        %1360 = vmatprep.subr.mxu0 0.0
        %1361 = vmatpush1.msra.mxu0 0.0
        %1362 = vmatprep.subr.mxu0 0.0
        %1363 = vmatpush1.msra.mxu0 0.0
        %1364 = vmatprep.mubr.f32.mxu0 0.0
        %1365 = vmatmul.mubr.f32.gmra.mrb[0].mxu0 %v1261
        %v1366 = vpop.f32.mrb[0].mxu0
        %v1367 = vadd.f32 %v1298, %v1366
        %v1368 = vpop.f32.mrb[0].mxu0
        %1369 = vmatprep.mubr.f32.mxu0 0.0
        %1370 = vmatmul.mubr.f32.gmra.mrb[0].mxu0 %v1262
        %v1371 = vpop.f32.mrb[0].mxu0
        %v1372 = vadd.f32 %v1298, %v1371
        %v1373 = vpop.f32.mrb[0].mxu0
        %1374 = vmatprep.mubr.f32.mxu0 0.0
        %1375 = vmatmul.mubr.f32.gmra.mrb[0].mxu0 %v1263
        %v1376 = vpop.f32.mrb[0].mxu0
        %v1377 = vadd.f32 %v1298, %v1376
        %v1378 = vpop.f32.mrb[0].mxu0
        %1379 = vmatprep.mubr.f32.mxu0 0.0
        %1380 = vmatmul.mubr.f32.gmra.mrb[0].mxu0 %v1264
        %v1381 = vpop.f32.mrb[0].mxu0
        %v1382 = vadd.f32 %v1298, %v1381
        %v1383 = vpop.f32.mrb[0].mxu0
        %1384 = vmatprep.mubr.f32.mxu0 0.0
        %1385 = vmatmul.mubr.f32.gmra.mrb[0].mxu0 %v1265
        %v1386 = vpop.f32.mrb[0].mxu0
        %v1387 = vadd.f32 %v1298, %v1386
        %v1388 = vpop.f32.mrb[0].mxu0
        %1389 = vmatprep.mubr.f32.mxu0 0.0
        %1390 = vmatmul.mubr.f32.gmra.mrb[0].mxu0 %v1266
        %v1391 = vpop.f32.mrb[0].mxu0
        %v1392 = vadd.f32 %v1298, %v1391
        %v1393 = vpop.f32.mrb[0].mxu0
        %1394 = vmatprep.mubr.f32.mxu0 0.0
        %1395 = vmatmul.mubr.f32.gmra.mrb[0].mxu0 %v1267
        %v1396 = vpop.f32.mrb[0].mxu0
        %v1397 = vadd.f32 %v1298, %v1396
        %v1398 = vpop.f32.mrb[0].mxu0
        %1399 = vmatprep.mubr.f32.mxu0 0.0
        %1400 = vmatmul.mubr.f32.gmra.mrb[0].mxu0 %v1268
        %v1401 = vpop.f32.mrb[0].mxu0
        %v1402 = vadd.f32 %v1298, %v1401
        %v1403 = vpop.f32.mrb[0].mxu0
        %1404 = vmatprep.mubr.f32.mxu0 0.0
        %1405 = vmatmul.mubr.f32.gmra.mrb[0].mxu0 %v1269
        %v1406 = vpop.f32.mrb[0].mxu0
        %v1407 = vadd.f32 %v1298, %v1406
        %v1408 = vpop.f32.mrb[0].mxu0
        %1409 = vmatprep.mubr.f32.mxu0 0.0
        %1410 = vmatmul.mubr.f32.gmra.mrb[0].mxu0 %v1270
        %v1411 = vpop.f32.mrb[0].mxu0
        %v1412 = vadd.f32 %v1298, %v1411
        %v1413 = vpop.f32.mrb[0].mxu0
        %1414 = vmatprep.mubr.f32.mxu0 0.0
        %1415 = vmatmul.mubr.f32.gmra.mrb[0].mxu0 %v1271
        %v1416 = vpop.f32.mrb[0].mxu0
        %v1417 = vadd.f32 %v1298, %v1416
        %v1418 = vpop.f32.mrb[0].mxu0
        %1419 = vmatprep.mubr.f32.mxu0 0.0
        %1420 = vmatmul.mubr.f32.gmra.mrb[0].mxu0 %v1272
        %v1421 = vpop.f32.mrb[0].mxu0
        %v1422 = vadd.f32 %v1298, %v1421
        %v1423 = vpop.f32.mrb[0].mxu0
        %1424 = vmatprep.mubr.f32.mxu0 0.0
        %1425 = vmatmul.mubr.f32.gmra.mrb[0].mxu0 %v1273
        %v1426 = vpop.f32.mrb[0].mxu0
        %v1427 = vadd.f32 %v1298, %v1426
        %v1428 = vpop.f32.mrb[0].mxu0
        %1429 = vmatprep.mubr.f32.mxu0 0.0
        %1430 = vmatmul.mubr.f32.gmra.mrb[0].mxu0 %v1274
        %v1431 = vpop.f32.mrb[0].mxu0
        %v1432 = vadd.f32 %v1298, %v1431
        %v1433 = vpop.f32.mrb[0].mxu0
        %1434 = vmatprep.mubr.f32.mxu0 0.0
        %1435 = vmatmul.mubr.f32.gmra.mrb[0].mxu0 %v1275
        %v1436 = vpop.f32.mrb[0].mxu0
        %v1437 = vadd.f32 %v1298, %v1436
        %v1438 = vpop.f32.mrb[0].mxu0
        %1439 = vmatprep.mubr.f32.mxu0 0.0
        %1440 = vmatmul.mubr.f32.gmra.mrb[0].mxu0 %v1276
        %v1441 = vpop.f32.mrb[0].mxu0
        %v1442 = vadd.f32 %v1298, %v1441
        %v1443 = vpop.f32.mrb[0].mxu0
        %1444 = vdwg.mxu0
        %vm1445 = vcmp.gt.f32.partialorder %v1367, 0.0
        %vm1446 = vcmp.gt.f32.partialorder %v1372, 0.0
        %vm1447 = vcmp.gt.f32.partialorder %v1377, 0.0
        %vm1448 = vcmp.gt.f32.partialorder %v1382, 0.0
        %vm1449 = vcmp.gt.f32.partialorder %v1387, 0.0
        %vm1450 = vcmp.gt.f32.partialorder %v1392, 0.0
        %vm1451 = vcmp.gt.f32.partialorder %v1397, 0.0
        %vm1452 = vcmp.gt.f32.partialorder %v1402, 0.0
        %vm1453 = vcmp.gt.f32.partialorder %v1407, 0.0
        %vm1454 = vcmp.gt.f32.partialorder %v1412, 0.0
        %vm1455 = vcmp.gt.f32.partialorder %v1417, 0.0
        %vm1456 = vcmp.gt.f32.partialorder %v1422, 0.0
        %vm1457 = vcmp.gt.f32.partialorder %v1427, 0.0
        %vm1458 = vcmp.gt.f32.partialorder %v1432, 0.0
        %vm1459 = vcmp.gt.f32.partialorder %v1437, 0.0
        %vm1460 = vcmp.gt.f32.partialorder %v1442, 0.0
        %v1461 = vmul.f32 %v1367, 0.01
        %v1462 = vmul.f32 %v1372, 0.01
        %v1463 = vmul.f32 %v1377, 0.01
        %v1464 = vmul.f32 %v1382, 0.01
        %v1465 = vmul.f32 %v1387, 0.01
        %v1466 = vmul.f32 %v1392, 0.01
        %v1467 = vmul.f32 %v1397, 0.01
        %v1468 = vmul.f32 %v1402, 0.01
        %v1469 = vmul.f32 %v1407, 0.01
        %v1470 = vmul.f32 %v1412, 0.01
        %v1471 = vmul.f32 %v1417, 0.01
        %v1472 = vmul.f32 %v1422, 0.01
        %v1473 = vmul.f32 %v1427, 0.01
        %v1474 = vmul.f32 %v1432, 0.01
        %v1475 = vmul.f32 %v1437, 0.01
        %v1476 = vmul.f32 %v1442, 0.01
        %v1477 = vsel %vm1445, %v1367, %v1461
        %v1478 = vsel %vm1446, %v1372, %v1462
        %v1479 = vsel %vm1447, %v1377, %v1463
        %v1480 = vsel %vm1448, %v1382, %v1464
        %v1481 = vsel %vm1449, %v1387, %v1465
        %v1482 = vsel %vm1450, %v1392, %v1466
        %v1483 = vsel %vm1451, %v1397, %v1467
        %v1484 = vsel %vm1452, %v1402, %v1468
        %v1485 = vsel %vm1453, %v1407, %v1469
        %v1486 = vsel %vm1454, %v1412, %v1470
        %v1487 = vsel %vm1455, %v1417, %v1471
        %v1488 = vsel %vm1456, %v1422, %v1472
        %v1489 = vsel %vm1457, %v1427, %v1473
        %v1490 = vsel %vm1458, %v1432, %v1474
        %v1491 = vsel %vm1459, %v1437, %v1475
        %v1492 = vsel %vm1460, %v1442, %v1476
        %v1493 = vld [vmem:[#allocation7 + $0x30] sm:$0xff]
        %v1494 = vld [vmem:[#allocation7 + $0x78] sm:$0xff]
        %v1495 = vld [vmem:[#allocation7 + $0xc0] sm:$0xff]
        %v1496 = vld [vmem:[#allocation7 + $0x108] sm:$0xff]
        %v1497 = vld [vmem:[#allocation7 + $0x150] sm:$0xff]
        %v1498 = vld [vmem:[#allocation7 + $0x198] sm:$0xff]
        %v1499 = vld [vmem:[#allocation7 + $0x1e0] sm:$0xff]
        %v1500 = vld [vmem:[#allocation7 + $0x228] sm:$0xff]
        %v1501 = vld [vmem:[#allocation7 + $0x270] sm:$0xff]
        %v1502 = vld [vmem:[#allocation7 + $0x2b8] sm:$0xff]
        %v1503 = vld [vmem:[#allocation7 + $0x300] sm:$0xff]
        %v1504 = vld [vmem:[#allocation7 + $0x348] sm:$0xff]
        %v1505 = vld [vmem:[#allocation7 + $0x390] sm:$0xff]
        %v1506 = vld [vmem:[#allocation7 + $0x3d8] sm:$0xff]
        %v1507 = vld [vmem:[#allocation7 + $0x420] sm:$0xff]
        %v1508 = vld [vmem:[#allocation7 + $0x468] sm:$0xff]
        %v1509 = vld [vmem:[%s3 + $0x6] sm:$0x1]
        %v1511 = vlaneseq
        %v1512 = vshrl.u32 %v1511, 7
        %v1513 = vsub.s32 0, %v1512
        %v1514 = vrot.slane %v1509, %v1513
        %1516 = vmatprep.subr.mxu0 0.0
        %1517 = vmatpush1.msra.mxu0 %v1493
        %1518 = vmatprep.subr.mxu0 0.0
        %1519 = vmatpush1.msra.mxu0 %v1494
        %1520 = vmatprep.subr.mxu0 0.0
        %1521 = vmatpush1.msra.mxu0 %v1495
        %1522 = vmatprep.subr.mxu0 0.0
        %1523 = vmatpush1.msra.mxu0 %v1496
        %1524 = vmatprep.subr.mxu0 0.0
        %1525 = vmatpush1.msra.mxu0 %v1497
        %1526 = vmatprep.subr.mxu0 0.0
        %1527 = vmatpush1.msra.mxu0 %v1498
        %1528 = vmatprep.subr.mxu0 0.0
        %1529 = vmatpush1.msra.mxu0 %v1499
        %1530 = vmatprep.subr.mxu0 0.0
        %1531 = vmatpush1.msra.mxu0 %v1500
        %1532 = vmatprep.subr.mxu0 0.0
        %1533 = vmatpush1.msra.mxu0 %v1501
        %1534 = vmatprep.subr.mxu0 0.0
        %1535 = vmatpush1.msra.mxu0 %v1502
        %1536 = vmatprep.subr.mxu0 0.0
        %1537 = vmatpush1.msra.mxu0 %v1503
        %1538 = vmatprep.subr.mxu0 0.0
        %1539 = vmatpush1.msra.mxu0 %v1504
        %1540 = vmatprep.subr.mxu0 0.0
        %1541 = vmatpush1.msra.mxu0 %v1505
        %1542 = vmatprep.subr.mxu0 0.0
        %1543 = vmatpush1.msra.mxu0 %v1506
        %1544 = vmatprep.subr.mxu0 0.0
        %1545 = vmatpush1.msra.mxu0 %v1507
        %1546 = vmatprep.subr.mxu0 0.0
        %1547 = vmatpush1.msra.mxu0 %v1508
        %1548 = vmatprep.subr.mxu0 0.0
        %1549 = vmatpush1.msra.mxu0 0.0
        %1550 = vmatprep.subr.mxu0 0.0
        %1551 = vmatpush1.msra.mxu0 0.0
        %1552 = vmatprep.subr.mxu0 0.0
        %1553 = vmatpush1.msra.mxu0 0.0
        %1554 = vmatprep.subr.mxu0 0.0
        %1555 = vmatpush1.msra.mxu0 0.0
        %1556 = vmatprep.subr.mxu0 0.0
        %1557 = vmatpush1.msra.mxu0 0.0
        %1558 = vmatprep.subr.mxu0 0.0
        %1559 = vmatpush1.msra.mxu0 0.0
        %1560 = vmatprep.subr.mxu0 0.0
        %1561 = vmatpush1.msra.mxu0 0.0
        %1562 = vmatprep.subr.mxu0 0.0
        %1563 = vmatpush1.msra.mxu0 0.0
        %1564 = vmatprep.subr.mxu0 0.0
        %1565 = vmatpush1.msra.mxu0 0.0
        %1566 = vmatprep.subr.mxu0 0.0
        %1567 = vmatpush1.msra.mxu0 0.0
        %1568 = vmatprep.subr.mxu0 0.0
        %1569 = vmatpush1.msra.mxu0 0.0
        %1570 = vmatprep.subr.mxu0 0.0
        %1571 = vmatpush1.msra.mxu0 0.0
        %1572 = vmatprep.subr.mxu0 0.0
        %1573 = vmatpush1.msra.mxu0 0.0
        %1574 = vmatprep.subr.mxu0 0.0
        %1575 = vmatpush1.msra.mxu0 0.0
        %1576 = vmatprep.subr.mxu0 0.0
        %1577 = vmatpush1.msra.mxu0 0.0
        %1578 = vmatprep.subr.mxu0 0.0
        %1579 = vmatpush1.msra.mxu0 0.0
        %1580 = vmatprep.mubr.f32.mxu0 0.0
        %1581 = vmatmul.mubr.f32.gmra.mrb[0].mxu0 %v1477
        %v1582 = vpop.f32.mrb[0].mxu0
        %v1583 = vadd.f32 %v1514, %v1582
        %v1584 = vpop.f32.mrb[0].mxu0
        %1585 = vmatprep.mubr.f32.mxu0 0.0
        %1586 = vmatmul.mubr.f32.gmra.mrb[0].mxu0 %v1478
        %v1587 = vpop.f32.mrb[0].mxu0
        %v1588 = vadd.f32 %v1514, %v1587
        %v1589 = vpop.f32.mrb[0].mxu0
        %1590 = vmatprep.mubr.f32.mxu0 0.0
        %1591 = vmatmul.mubr.f32.gmra.mrb[0].mxu0 %v1479
        %v1592 = vpop.f32.mrb[0].mxu0
        %v1593 = vadd.f32 %v1514, %v1592
        %v1594 = vpop.f32.mrb[0].mxu0
        %1595 = vmatprep.mubr.f32.mxu0 0.0
        %1596 = vmatmul.mubr.f32.gmra.mrb[0].mxu0 %v1480
        %v1597 = vpop.f32.mrb[0].mxu0
        %v1598 = vadd.f32 %v1514, %v1597
        %v1599 = vpop.f32.mrb[0].mxu0
        %1600 = vmatprep.mubr.f32.mxu0 0.0
        %1601 = vmatmul.mubr.f32.gmra.mrb[0].mxu0 %v1481
        %v1602 = vpop.f32.mrb[0].mxu0
        %v1603 = vadd.f32 %v1514, %v1602
        %v1604 = vpop.f32.mrb[0].mxu0
        %1605 = vmatprep.mubr.f32.mxu0 0.0
        %1606 = vmatmul.mubr.f32.gmra.mrb[0].mxu0 %v1482
        %v1607 = vpop.f32.mrb[0].mxu0
        %v1608 = vadd.f32 %v1514, %v1607
        %v1609 = vpop.f32.mrb[0].mxu0
        %1610 = vmatprep.mubr.f32.mxu0 0.0
        %1611 = vmatmul.mubr.f32.gmra.mrb[0].mxu0 %v1483
        %v1612 = vpop.f32.mrb[0].mxu0
        %v1613 = vadd.f32 %v1514, %v1612
        %v1614 = vpop.f32.mrb[0].mxu0
        %1615 = vmatprep.mubr.f32.mxu0 0.0
        %1616 = vmatmul.mubr.f32.gmra.mrb[0].mxu0 %v1484
        %v1617 = vpop.f32.mrb[0].mxu0
        %v1618 = vadd.f32 %v1514, %v1617
        %v1619 = vpop.f32.mrb[0].mxu0
        %1620 = vmatprep.mubr.f32.mxu0 0.0
        %1621 = vmatmul.mubr.f32.gmra.mrb[0].mxu0 %v1485
        %v1622 = vpop.f32.mrb[0].mxu0
        %v1623 = vadd.f32 %v1514, %v1622
        %v1624 = vpop.f32.mrb[0].mxu0
        %1625 = vmatprep.mubr.f32.mxu0 0.0
        %1626 = vmatmul.mubr.f32.gmra.mrb[0].mxu0 %v1486
        %v1627 = vpop.f32.mrb[0].mxu0
        %v1628 = vadd.f32 %v1514, %v1627
        %v1629 = vpop.f32.mrb[0].mxu0
        %1630 = vmatprep.mubr.f32.mxu0 0.0
        %1631 = vmatmul.mubr.f32.gmra.mrb[0].mxu0 %v1487
        %v1632 = vpop.f32.mrb[0].mxu0
        %v1633 = vadd.f32 %v1514, %v1632
        %v1634 = vpop.f32.mrb[0].mxu0
        %1635 = vmatprep.mubr.f32.mxu0 0.0
        %1636 = vmatmul.mubr.f32.gmra.mrb[0].mxu0 %v1488
        %v1637 = vpop.f32.mrb[0].mxu0
        %v1638 = vadd.f32 %v1514, %v1637
        %v1639 = vpop.f32.mrb[0].mxu0
        %1640 = vmatprep.mubr.f32.mxu0 0.0
        %1641 = vmatmul.mubr.f32.gmra.mrb[0].mxu0 %v1489
        %v1642 = vpop.f32.mrb[0].mxu0
        %v1643 = vadd.f32 %v1514, %v1642
        %v1644 = vpop.f32.mrb[0].mxu0
        %1645 = vmatprep.mubr.f32.mxu0 0.0
        %1646 = vmatmul.mubr.f32.gmra.mrb[0].mxu0 %v1490
        %v1647 = vpop.f32.mrb[0].mxu0
        %v1648 = vadd.f32 %v1514, %v1647
        %v1649 = vpop.f32.mrb[0].mxu0
        %1650 = vmatprep.mubr.f32.mxu0 0.0
        %1651 = vmatmul.mubr.f32.gmra.mrb[0].mxu0 %v1491
        %v1652 = vpop.f32.mrb[0].mxu0
        %v1653 = vadd.f32 %v1514, %v1652
        %v1654 = vpop.f32.mrb[0].mxu0
        %1655 = vmatprep.mubr.f32.mxu0 0.0
        %1656 = vmatmul.mubr.f32.gmra.mrb[0].mxu0 %v1492
        %v1657 = vpop.f32.mrb[0].mxu0
        %v1658 = vadd.f32 %v1514, %v1657
        %v1659 = vpop.f32.mrb[0].mxu0
        %1660 = vdwg.mxu0
        %vm1661 = vcmp.gt.f32.partialorder %v1583, 0.0
        %vm1662 = vcmp.gt.f32.partialorder %v1588, 0.0
        %vm1663 = vcmp.gt.f32.partialorder %v1593, 0.0
        %vm1664 = vcmp.gt.f32.partialorder %v1598, 0.0
        %vm1665 = vcmp.gt.f32.partialorder %v1603, 0.0
        %vm1666 = vcmp.gt.f32.partialorder %v1608, 0.0
        %vm1667 = vcmp.gt.f32.partialorder %v1613, 0.0
        %vm1668 = vcmp.gt.f32.partialorder %v1618, 0.0
        %vm1669 = vcmp.gt.f32.partialorder %v1623, 0.0
        %vm1670 = vcmp.gt.f32.partialorder %v1628, 0.0
        %vm1671 = vcmp.gt.f32.partialorder %v1633, 0.0
        %vm1672 = vcmp.gt.f32.partialorder %v1638, 0.0
        %vm1673 = vcmp.gt.f32.partialorder %v1643, 0.0
        %vm1674 = vcmp.gt.f32.partialorder %v1648, 0.0
        %vm1675 = vcmp.gt.f32.partialorder %v1653, 0.0
        %vm1676 = vcmp.gt.f32.partialorder %v1658, 0.0
        %v1677 = vmul.f32 %v1583, 0.01
        %v1678 = vmul.f32 %v1588, 0.01
        %v1679 = vmul.f32 %v1593, 0.01
        %v1680 = vmul.f32 %v1598, 0.01
        %v1681 = vmul.f32 %v1603, 0.01
        %v1682 = vmul.f32 %v1608, 0.01
        %v1683 = vmul.f32 %v1613, 0.01
        %v1684 = vmul.f32 %v1618, 0.01
        %v1685 = vmul.f32 %v1623, 0.01
        %v1686 = vmul.f32 %v1628, 0.01
        %v1687 = vmul.f32 %v1633, 0.01
        %v1688 = vmul.f32 %v1638, 0.01
        %v1689 = vmul.f32 %v1643, 0.01
        %v1690 = vmul.f32 %v1648, 0.01
        %v1691 = vmul.f32 %v1653, 0.01
        %v1692 = vmul.f32 %v1658, 0.01
        %v1693 = vsel %vm1661, %v1583, %v1677
        %v1694 = vsel %vm1662, %v1588, %v1678
        %v1695 = vsel %vm1663, %v1593, %v1679
        %v1696 = vsel %vm1664, %v1598, %v1680
        %v1697 = vsel %vm1665, %v1603, %v1681
        %v1698 = vsel %vm1666, %v1608, %v1682
        %v1699 = vsel %vm1667, %v1613, %v1683
        %v1700 = vsel %vm1668, %v1618, %v1684
        %v1701 = vsel %vm1669, %v1623, %v1685
        %v1702 = vsel %vm1670, %v1628, %v1686
        %v1703 = vsel %vm1671, %v1633, %v1687
        %v1704 = vsel %vm1672, %v1638, %v1688
        %v1705 = vsel %vm1673, %v1643, %v1689
        %v1706 = vsel %vm1674, %v1648, %v1690
        %v1707 = vsel %vm1675, %v1653, %v1691
        %v1708 = vsel %vm1676, %v1658, %v1692
        %v1709 = vld [vmem:[#allocation7 + $0x38] sm:$0xff]
        %v1710 = vld [vmem:[#allocation7 + $0x80] sm:$0xff]
        %v1711 = vld [vmem:[#allocation7 + $0xc8] sm:$0xff]
        %v1712 = vld [vmem:[#allocation7 + $0x110] sm:$0xff]
        %v1713 = vld [vmem:[#allocation7 + $0x158] sm:$0xff]
        %v1714 = vld [vmem:[#allocation7 + $0x1a0] sm:$0xff]
        %v1715 = vld [vmem:[#allocation7 + $0x1e8] sm:$0xff]
        %v1716 = vld [vmem:[#allocation7 + $0x230] sm:$0xff]
        %v1717 = vld [vmem:[#allocation7 + $0x278] sm:$0xff]
        %v1718 = vld [vmem:[#allocation7 + $0x2c0] sm:$0xff]
        %v1719 = vld [vmem:[#allocation7 + $0x308] sm:$0xff]
        %v1720 = vld [vmem:[#allocation7 + $0x350] sm:$0xff]
        %v1721 = vld [vmem:[#allocation7 + $0x398] sm:$0xff]
        %v1722 = vld [vmem:[#allocation7 + $0x3e0] sm:$0xff]
        %v1723 = vld [vmem:[#allocation7 + $0x428] sm:$0xff]
        %v1724 = vld [vmem:[#allocation7 + $0x470] sm:$0xff]
        %v1725 = vld [vmem:[%s3 + $0x7] sm:$0x1]
        %v1727 = vlaneseq
        %v1728 = vshrl.u32 %v1727, 7
        %v1729 = vsub.s32 0, %v1728
        %v1730 = vrot.slane %v1725, %v1729
        %1732 = vmatprep.subr.mxu0 0.0
        %1733 = vmatpush1.msra.mxu0 %v1709
        %1734 = vmatprep.subr.mxu0 0.0
        %1735 = vmatpush1.msra.mxu0 %v1710
        %1736 = vmatprep.subr.mxu0 0.0
        %1737 = vmatpush1.msra.mxu0 %v1711
        %1738 = vmatprep.subr.mxu0 0.0
        %1739 = vmatpush1.msra.mxu0 %v1712
        %1740 = vmatprep.subr.mxu0 0.0
        %1741 = vmatpush1.msra.mxu0 %v1713
        %1742 = vmatprep.subr.mxu0 0.0
        %1743 = vmatpush1.msra.mxu0 %v1714
        %1744 = vmatprep.subr.mxu0 0.0
        %1745 = vmatpush1.msra.mxu0 %v1715
        %1746 = vmatprep.subr.mxu0 0.0
        %1747 = vmatpush1.msra.mxu0 %v1716
        %1748 = vmatprep.subr.mxu0 0.0
        %1749 = vmatpush1.msra.mxu0 %v1717
        %1750 = vmatprep.subr.mxu0 0.0
        %1751 = vmatpush1.msra.mxu0 %v1718
        %1752 = vmatprep.subr.mxu0 0.0
        %1753 = vmatpush1.msra.mxu0 %v1719
        %1754 = vmatprep.subr.mxu0 0.0
        %1755 = vmatpush1.msra.mxu0 %v1720
        %1756 = vmatprep.subr.mxu0 0.0
        %1757 = vmatpush1.msra.mxu0 %v1721
        %1758 = vmatprep.subr.mxu0 0.0
        %1759 = vmatpush1.msra.mxu0 %v1722
        %1760 = vmatprep.subr.mxu0 0.0
        %1761 = vmatpush1.msra.mxu0 %v1723
        %1762 = vmatprep.subr.mxu0 0.0
        %1763 = vmatpush1.msra.mxu0 %v1724
        %1764 = vmatprep.subr.mxu0 0.0
        %1765 = vmatpush1.msra.mxu0 0.0
        %1766 = vmatprep.subr.mxu0 0.0
        %1767 = vmatpush1.msra.mxu0 0.0
        %1768 = vmatprep.subr.mxu0 0.0
        %1769 = vmatpush1.msra.mxu0 0.0
        %1770 = vmatprep.subr.mxu0 0.0
        %1771 = vmatpush1.msra.mxu0 0.0
        %1772 = vmatprep.subr.mxu0 0.0
        %1773 = vmatpush1.msra.mxu0 0.0
        %1774 = vmatprep.subr.mxu0 0.0
        %1775 = vmatpush1.msra.mxu0 0.0
        %1776 = vmatprep.subr.mxu0 0.0
        %1777 = vmatpush1.msra.mxu0 0.0
        %1778 = vmatprep.subr.mxu0 0.0
        %1779 = vmatpush1.msra.mxu0 0.0
        %1780 = vmatprep.subr.mxu0 0.0
        %1781 = vmatpush1.msra.mxu0 0.0
        %1782 = vmatprep.subr.mxu0 0.0
        %1783 = vmatpush1.msra.mxu0 0.0
        %1784 = vmatprep.subr.mxu0 0.0
        %1785 = vmatpush1.msra.mxu0 0.0
        %1786 = vmatprep.subr.mxu0 0.0
        %1787 = vmatpush1.msra.mxu0 0.0
        %1788 = vmatprep.subr.mxu0 0.0
        %1789 = vmatpush1.msra.mxu0 0.0
        %1790 = vmatprep.subr.mxu0 0.0
        %1791 = vmatpush1.msra.mxu0 0.0
        %1792 = vmatprep.subr.mxu0 0.0
        %1793 = vmatpush1.msra.mxu0 0.0
        %1794 = vmatprep.subr.mxu0 0.0
        %1795 = vmatpush1.msra.mxu0 0.0
        %1796 = vmatprep.mubr.f32.mxu0 0.0
        %1797 = vmatmul.mubr.f32.gmra.mrb[0].mxu0 %v1693
        %v1798 = vpop.f32.mrb[0].mxu0
        %v1799 = vadd.f32 %v1730, %v1798
        %v1800 = vpop.f32.mrb[0].mxu0
        %1801 = vmatprep.mubr.f32.mxu0 0.0
        %1802 = vmatmul.mubr.f32.gmra.mrb[0].mxu0 %v1694
        %v1803 = vpop.f32.mrb[0].mxu0
        %v1804 = vadd.f32 %v1730, %v1803
        %v1805 = vpop.f32.mrb[0].mxu0
        %1806 = vmatprep.mubr.f32.mxu0 0.0
        %1807 = vmatmul.mubr.f32.gmra.mrb[0].mxu0 %v1695
        %v1808 = vpop.f32.mrb[0].mxu0
        %v1809 = vadd.f32 %v1730, %v1808
        %v1810 = vpop.f32.mrb[0].mxu0
        %1811 = vmatprep.mubr.f32.mxu0 0.0
        %1812 = vmatmul.mubr.f32.gmra.mrb[0].mxu0 %v1696
        %v1813 = vpop.f32.mrb[0].mxu0
        %v1814 = vadd.f32 %v1730, %v1813
        %v1815 = vpop.f32.mrb[0].mxu0
        %1816 = vmatprep.mubr.f32.mxu0 0.0
        %1817 = vmatmul.mubr.f32.gmra.mrb[0].mxu0 %v1697
        %v1818 = vpop.f32.mrb[0].mxu0
        %v1819 = vadd.f32 %v1730, %v1818
        %v1820 = vpop.f32.mrb[0].mxu0
        %1821 = vmatprep.mubr.f32.mxu0 0.0
        %1822 = vmatmul.mubr.f32.gmra.mrb[0].mxu0 %v1698
        %v1823 = vpop.f32.mrb[0].mxu0
        %v1824 = vadd.f32 %v1730, %v1823
        %v1825 = vpop.f32.mrb[0].mxu0
        %1826 = vmatprep.mubr.f32.mxu0 0.0
        %1827 = vmatmul.mubr.f32.gmra.mrb[0].mxu0 %v1699
        %v1828 = vpop.f32.mrb[0].mxu0
        %v1829 = vadd.f32 %v1730, %v1828
        %v1830 = vpop.f32.mrb[0].mxu0
        %1831 = vmatprep.mubr.f32.mxu0 0.0
        %1832 = vmatmul.mubr.f32.gmra.mrb[0].mxu0 %v1700
        %v1833 = vpop.f32.mrb[0].mxu0
        %v1834 = vadd.f32 %v1730, %v1833
        %v1835 = vpop.f32.mrb[0].mxu0
        %1836 = vmatprep.mubr.f32.mxu0 0.0
        %1837 = vmatmul.mubr.f32.gmra.mrb[0].mxu0 %v1701
        %v1838 = vpop.f32.mrb[0].mxu0
        %v1839 = vadd.f32 %v1730, %v1838
        %v1840 = vpop.f32.mrb[0].mxu0
        %1841 = vmatprep.mubr.f32.mxu0 0.0
        %1842 = vmatmul.mubr.f32.gmra.mrb[0].mxu0 %v1702
        %v1843 = vpop.f32.mrb[0].mxu0
        %v1844 = vadd.f32 %v1730, %v1843
        %v1845 = vpop.f32.mrb[0].mxu0
        %1846 = vmatprep.mubr.f32.mxu0 0.0
        %1847 = vmatmul.mubr.f32.gmra.mrb[0].mxu0 %v1703
        %v1848 = vpop.f32.mrb[0].mxu0
        %v1849 = vadd.f32 %v1730, %v1848
        %v1850 = vpop.f32.mrb[0].mxu0
        %1851 = vmatprep.mubr.f32.mxu0 0.0
        %1852 = vmatmul.mubr.f32.gmra.mrb[0].mxu0 %v1704
        %v1853 = vpop.f32.mrb[0].mxu0
        %v1854 = vadd.f32 %v1730, %v1853
        %v1855 = vpop.f32.mrb[0].mxu0
        %1856 = vmatprep.mubr.f32.mxu0 0.0
        %1857 = vmatmul.mubr.f32.gmra.mrb[0].mxu0 %v1705
        %v1858 = vpop.f32.mrb[0].mxu0
        %v1859 = vadd.f32 %v1730, %v1858
        %v1860 = vpop.f32.mrb[0].mxu0
        %1861 = vmatprep.mubr.f32.mxu0 0.0
        %1862 = vmatmul.mubr.f32.gmra.mrb[0].mxu0 %v1706
        %v1863 = vpop.f32.mrb[0].mxu0
        %v1864 = vadd.f32 %v1730, %v1863
        %v1865 = vpop.f32.mrb[0].mxu0
        %1866 = vmatprep.mubr.f32.mxu0 0.0
        %1867 = vmatmul.mubr.f32.gmra.mrb[0].mxu0 %v1707
        %v1868 = vpop.f32.mrb[0].mxu0
        %v1869 = vadd.f32 %v1730, %v1868
        %v1870 = vpop.f32.mrb[0].mxu0
        %1871 = vmatprep.mubr.f32.mxu0 0.0
        %1872 = vmatmul.mubr.f32.gmra.mrb[0].mxu0 %v1708
        %v1873 = vpop.f32.mrb[0].mxu0
        %v1874 = vadd.f32 %v1730, %v1873
        %v1875 = vpop.f32.mrb[0].mxu0
        %1876 = vdwg.mxu0
        %vm1877 = vcmp.gt.f32.partialorder %v1799, 0.0
        %vm1878 = vcmp.gt.f32.partialorder %v1804, 0.0
        %vm1879 = vcmp.gt.f32.partialorder %v1809, 0.0
        %vm1880 = vcmp.gt.f32.partialorder %v1814, 0.0
        %vm1881 = vcmp.gt.f32.partialorder %v1819, 0.0
        %vm1882 = vcmp.gt.f32.partialorder %v1824, 0.0
        %vm1883 = vcmp.gt.f32.partialorder %v1829, 0.0
        %vm1884 = vcmp.gt.f32.partialorder %v1834, 0.0
        %vm1885 = vcmp.gt.f32.partialorder %v1839, 0.0
        %vm1886 = vcmp.gt.f32.partialorder %v1844, 0.0
        %vm1887 = vcmp.gt.f32.partialorder %v1849, 0.0
        %vm1888 = vcmp.gt.f32.partialorder %v1854, 0.0
        %vm1889 = vcmp.gt.f32.partialorder %v1859, 0.0
        %vm1890 = vcmp.gt.f32.partialorder %v1864, 0.0
        %vm1891 = vcmp.gt.f32.partialorder %v1869, 0.0
        %vm1892 = vcmp.gt.f32.partialorder %v1874, 0.0
        %v1893 = vmul.f32 %v1799, 0.01
        %v1894 = vmul.f32 %v1804, 0.01
        %v1895 = vmul.f32 %v1809, 0.01
        %v1896 = vmul.f32 %v1814, 0.01
        %v1897 = vmul.f32 %v1819, 0.01
        %v1898 = vmul.f32 %v1824, 0.01
        %v1899 = vmul.f32 %v1829, 0.01
        %v1900 = vmul.f32 %v1834, 0.01
        %v1901 = vmul.f32 %v1839, 0.01
        %v1902 = vmul.f32 %v1844, 0.01
        %v1903 = vmul.f32 %v1849, 0.01
        %v1904 = vmul.f32 %v1854, 0.01
        %v1905 = vmul.f32 %v1859, 0.01
        %v1906 = vmul.f32 %v1864, 0.01
        %v1907 = vmul.f32 %v1869, 0.01
        %v1908 = vmul.f32 %v1874, 0.01
        %v1909 = vsel %vm1877, %v1799, %v1893
        %v1910 = vsel %vm1878, %v1804, %v1894
        %v1911 = vsel %vm1879, %v1809, %v1895
        %v1912 = vsel %vm1880, %v1814, %v1896
        %v1913 = vsel %vm1881, %v1819, %v1897
        %v1914 = vsel %vm1882, %v1824, %v1898
        %v1915 = vsel %vm1883, %v1829, %v1899
        %v1916 = vsel %vm1884, %v1834, %v1900
        %v1917 = vsel %vm1885, %v1839, %v1901
        %v1918 = vsel %vm1886, %v1844, %v1902
        %v1919 = vsel %vm1887, %v1849, %v1903
        %v1920 = vsel %vm1888, %v1854, %v1904
        %v1921 = vsel %vm1889, %v1859, %v1905
        %v1922 = vsel %vm1890, %v1864, %v1906
        %v1923 = vsel %vm1891, %v1869, %v1907
        %v1924 = vsel %vm1892, %v1874, %v1908
        %v1925 = vld [vmem:[#allocation7 + $0x40] sm:$0xff]
        %v1926 = vld [vmem:[#allocation7 + $0x88] sm:$0xff]
        %v1927 = vld [vmem:[#allocation7 + $0xd0] sm:$0xff]
        %v1928 = vld [vmem:[#allocation7 + $0x118] sm:$0xff]
        %v1929 = vld [vmem:[#allocation7 + $0x160] sm:$0xff]
        %v1930 = vld [vmem:[#allocation7 + $0x1a8] sm:$0xff]
        %v1931 = vld [vmem:[#allocation7 + $0x1f0] sm:$0xff]
        %v1932 = vld [vmem:[#allocation7 + $0x238] sm:$0xff]
        %v1933 = vld [vmem:[#allocation7 + $0x280] sm:$0xff]
        %v1934 = vld [vmem:[#allocation7 + $0x2c8] sm:$0xff]
        %v1935 = vld [vmem:[#allocation7 + $0x310] sm:$0xff]
        %v1936 = vld [vmem:[#allocation7 + $0x358] sm:$0xff]
        %v1937 = vld [vmem:[#allocation7 + $0x3a0] sm:$0xff]
        %v1938 = vld [vmem:[#allocation7 + $0x3e8] sm:$0xff]
        %v1939 = vld [vmem:[#allocation7 + $0x430] sm:$0xff]
        %v1940 = vld [vmem:[#allocation7 + $0x478] sm:$0xff]
        %v1941 = vld [vmem:[%s3 + $0x8] sm:$0x1]
        %v1943 = vlaneseq
        %v1944 = vshrl.u32 %v1943, 7
        %v1945 = vsub.s32 0, %v1944
        %v1946 = vrot.slane %v1941, %v1945
        %1948 = vmatprep.subr.mxu0 0.0
        %1949 = vmatpush1.msra.mxu0 %v1925
        %1950 = vmatprep.subr.mxu0 0.0
        %1951 = vmatpush1.msra.mxu0 %v1926
        %1952 = vmatprep.subr.mxu0 0.0
        %1953 = vmatpush1.msra.mxu0 %v1927
        %1954 = vmatprep.subr.mxu0 0.0
        %1955 = vmatpush1.msra.mxu0 %v1928
        %1956 = vmatprep.subr.mxu0 0.0
        %1957 = vmatpush1.msra.mxu0 %v1929
        %1958 = vmatprep.subr.mxu0 0.0
        %1959 = vmatpush1.msra.mxu0 %v1930
        %1960 = vmatprep.subr.mxu0 0.0
        %1961 = vmatpush1.msra.mxu0 %v1931
        %1962 = vmatprep.subr.mxu0 0.0
        %1963 = vmatpush1.msra.mxu0 %v1932
        %1964 = vmatprep.subr.mxu0 0.0
        %1965 = vmatpush1.msra.mxu0 %v1933
        %1966 = vmatprep.subr.mxu0 0.0
        %1967 = vmatpush1.msra.mxu0 %v1934
        %1968 = vmatprep.subr.mxu0 0.0
        %1969 = vmatpush1.msra.mxu0 %v1935
        %1970 = vmatprep.subr.mxu0 0.0
        %1971 = vmatpush1.msra.mxu0 %v1936
        %1972 = vmatprep.subr.mxu0 0.0
        %1973 = vmatpush1.msra.mxu0 %v1937
        %1974 = vmatprep.subr.mxu0 0.0
        %1975 = vmatpush1.msra.mxu0 %v1938
        %1976 = vmatprep.subr.mxu0 0.0
        %1977 = vmatpush1.msra.mxu0 %v1939
        %1978 = vmatprep.subr.mxu0 0.0
        %1979 = vmatpush1.msra.mxu0 %v1940
        %1980 = vmatprep.subr.mxu0 0.0
        %1981 = vmatpush1.msra.mxu0 0.0
        %1982 = vmatprep.subr.mxu0 0.0
        %1983 = vmatpush1.msra.mxu0 0.0
        %1984 = vmatprep.subr.mxu0 0.0
        %1985 = vmatpush1.msra.mxu0 0.0
        %1986 = vmatprep.subr.mxu0 0.0
        %1987 = vmatpush1.msra.mxu0 0.0
        %1988 = vmatprep.subr.mxu0 0.0
        %1989 = vmatpush1.msra.mxu0 0.0
        %1990 = vmatprep.subr.mxu0 0.0
        %1991 = vmatpush1.msra.mxu0 0.0
        %1992 = vmatprep.subr.mxu0 0.0
        %1993 = vmatpush1.msra.mxu0 0.0
        %1994 = vmatprep.subr.mxu0 0.0
        %1995 = vmatpush1.msra.mxu0 0.0
        %1996 = vmatprep.subr.mxu0 0.0
        %1997 = vmatpush1.msra.mxu0 0.0
        %1998 = vmatprep.subr.mxu0 0.0
        %1999 = vmatpush1.msra.mxu0 0.0
        %2000 = vmatprep.subr.mxu0 0.0
        %2001 = vmatpush1.msra.mxu0 0.0
        %2002 = vmatprep.subr.mxu0 0.0
        %2003 = vmatpush1.msra.mxu0 0.0
        %2004 = vmatprep.subr.mxu0 0.0
        %2005 = vmatpush1.msra.mxu0 0.0
        %2006 = vmatprep.subr.mxu0 0.0
        %2007 = vmatpush1.msra.mxu0 0.0
        %2008 = vmatprep.subr.mxu0 0.0
        %2009 = vmatpush1.msra.mxu0 0.0
        %2010 = vmatprep.subr.mxu0 0.0
        %2011 = vmatpush1.msra.mxu0 0.0
        %2012 = vmatprep.mubr.f32.mxu0 0.0
        %2013 = vmatmul.mubr.f32.gmra.mrb[0].mxu0 %v1909
        %v2014 = vpop.f32.mrb[0].mxu0
        %v2015 = vadd.f32 %v1946, %v2014
        %v2016 = vpop.f32.mrb[0].mxu0
        %2017 = vmatprep.mubr.f32.mxu0 0.0
        %2018 = vmatmul.mubr.f32.gmra.mrb[0].mxu0 %v1910
        %v2019 = vpop.f32.mrb[0].mxu0
        %v2020 = vadd.f32 %v1946, %v2019
        %v2021 = vpop.f32.mrb[0].mxu0
        %2022 = vmatprep.mubr.f32.mxu0 0.0
        %2023 = vmatmul.mubr.f32.gmra.mrb[0].mxu0 %v1911
        %v2024 = vpop.f32.mrb[0].mxu0
        %v2025 = vadd.f32 %v1946, %v2024
        %v2026 = vpop.f32.mrb[0].mxu0
        %2027 = vmatprep.mubr.f32.mxu0 0.0
        %2028 = vmatmul.mubr.f32.gmra.mrb[0].mxu0 %v1912
        %v2029 = vpop.f32.mrb[0].mxu0
        %v2030 = vadd.f32 %v1946, %v2029
        %v2031 = vpop.f32.mrb[0].mxu0
        %2032 = vmatprep.mubr.f32.mxu0 0.0
        %2033 = vmatmul.mubr.f32.gmra.mrb[0].mxu0 %v1913
        %v2034 = vpop.f32.mrb[0].mxu0
        %v2035 = vadd.f32 %v1946, %v2034
        %v2036 = vpop.f32.mrb[0].mxu0
        %2037 = vmatprep.mubr.f32.mxu0 0.0
        %2038 = vmatmul.mubr.f32.gmra.mrb[0].mxu0 %v1914
        %v2039 = vpop.f32.mrb[0].mxu0
        %v2040 = vadd.f32 %v1946, %v2039
        %v2041 = vpop.f32.mrb[0].mxu0
        %2042 = vmatprep.mubr.f32.mxu0 0.0
        %2043 = vmatmul.mubr.f32.gmra.mrb[0].mxu0 %v1915
        %v2044 = vpop.f32.mrb[0].mxu0
        %v2045 = vadd.f32 %v1946, %v2044
        %v2046 = vpop.f32.mrb[0].mxu0
        %2047 = vmatprep.mubr.f32.mxu0 0.0
        %2048 = vmatmul.mubr.f32.gmra.mrb[0].mxu0 %v1916
        %v2049 = vpop.f32.mrb[0].mxu0
        %v2050 = vadd.f32 %v1946, %v2049
        %v2051 = vpop.f32.mrb[0].mxu0
        %2052 = vmatprep.mubr.f32.mxu0 0.0
        %2053 = vmatmul.mubr.f32.gmra.mrb[0].mxu0 %v1917
        %v2054 = vpop.f32.mrb[0].mxu0
        %v2055 = vadd.f32 %v1946, %v2054
        %v2056 = vpop.f32.mrb[0].mxu0
        %2057 = vmatprep.mubr.f32.mxu0 0.0
        %2058 = vmatmul.mubr.f32.gmra.mrb[0].mxu0 %v1918
        %v2059 = vpop.f32.mrb[0].mxu0
        %v2060 = vadd.f32 %v1946, %v2059
        %v2061 = vpop.f32.mrb[0].mxu0
        %2062 = vmatprep.mubr.f32.mxu0 0.0
        %2063 = vmatmul.mubr.f32.gmra.mrb[0].mxu0 %v1919
        %v2064 = vpop.f32.mrb[0].mxu0
        %v2065 = vadd.f32 %v1946, %v2064
        %v2066 = vpop.f32.mrb[0].mxu0
        %2067 = vmatprep.mubr.f32.mxu0 0.0
        %2068 = vmatmul.mubr.f32.gmra.mrb[0].mxu0 %v1920
        %v2069 = vpop.f32.mrb[0].mxu0
        %v2070 = vadd.f32 %v1946, %v2069
        %v2071 = vpop.f32.mrb[0].mxu0
        %2072 = vmatprep.mubr.f32.mxu0 0.0
        %2073 = vmatmul.mubr.f32.gmra.mrb[0].mxu0 %v1921
        %v2074 = vpop.f32.mrb[0].mxu0
        %v2075 = vadd.f32 %v1946, %v2074
        %v2076 = vpop.f32.mrb[0].mxu0
        %2077 = vmatprep.mubr.f32.mxu0 0.0
        %2078 = vmatmul.mubr.f32.gmra.mrb[0].mxu0 %v1922
        %v2079 = vpop.f32.mrb[0].mxu0
        %v2080 = vadd.f32 %v1946, %v2079
        %v2081 = vpop.f32.mrb[0].mxu0
        %2082 = vmatprep.mubr.f32.mxu0 0.0
        %2083 = vmatmul.mubr.f32.gmra.mrb[0].mxu0 %v1923
        %v2084 = vpop.f32.mrb[0].mxu0
        %v2085 = vadd.f32 %v1946, %v2084
        %v2086 = vpop.f32.mrb[0].mxu0
        %2087 = vmatprep.mubr.f32.mxu0 0.0
        %2088 = vmatmul.mubr.f32.gmra.mrb[0].mxu0 %v1924
        %v2089 = vpop.f32.mrb[0].mxu0
        %v2090 = vadd.f32 %v1946, %v2089
        %v2091 = vpop.f32.mrb[0].mxu0
        %2092 = vdwg.mxu0
        %2093 = vst [vmem:[%s300] sm:$0xff] %v2015
        %2094 = vst [vmem:[%s300 + $0x8] sm:$0xff] %v2020
        %2095 = vst [vmem:[%s300 + $0x10] sm:$0xff] %v2025
        %2096 = vst [vmem:[%s300 + $0x18] sm:$0xff] %v2030
        %2097 = vst [vmem:[%s300 + $0x20] sm:$0xff] %v2035
        %2098 = vst [vmem:[%s300 + $0x28] sm:$0xff] %v2040
        %2099 = vst [vmem:[%s300 + $0x30] sm:$0xff] %v2045
        %2100 = vst [vmem:[%s300 + $0x38] sm:$0xff] %v2050
        %2101 = vst [vmem:[%s300 + $0x40] sm:$0xff] %v2055
        %2102 = vst [vmem:[%s300 + $0x48] sm:$0xff] %v2060
        %2103 = vst [vmem:[%s300 + $0x50] sm:$0xff] %v2065
        %2104 = vst [vmem:[%s300 + $0x58] sm:$0xff] %v2070
        %2105 = vst [vmem:[%s300 + $0x60] sm:$0xff] %v2075
        %2106 = vst [vmem:[%s300 + $0x68] sm:$0xff] %v2080
        %2107 = vst [vmem:[%s300 + $0x70] sm:$0xff] %v2085
        %2108 = vst [vmem:[%s300 + $0x78] sm:$0xff] %v2090
        %2109 = vst [vmem:[%s307] sm:$0xff] %v1087
        %2110 = vst [vmem:[%s307 + $0x8] sm:$0xff] %v1089
        %2111 = vst [vmem:[%s307 + $0x10] sm:$0xff] %v1093
        %2112 = vst [vmem:[%s307 + $0x18] sm:$0xff] %v1095
        %2113 = vst [vmem:[%s307 + $0x20] sm:$0xff] %v1099
        %2114 = vst [vmem:[%s307 + $0x28] sm:$0xff] %v1101
        %2115 = vst [vmem:[%s307 + $0x30] sm:$0xff] %v1105
        %2116 = vst [vmem:[%s307 + $0x38] sm:$0xff] %v1107
        %2117 = vst [vmem:[%s307 + $0x40] sm:$0xff] %v1111
        %2118 = vst [vmem:[%s307 + $0x48] sm:$0xff] %v1113
        %2119 = vst [vmem:[%s307 + $0x50] sm:$0xff] %v1117
        %2120 = vst [vmem:[%s307 + $0x58] sm:$0xff] %v1119
        %2121 = vst [vmem:[%s307 + $0x60] sm:$0xff] %v1123
        %2122 = vst [vmem:[%s307 + $0x68] sm:$0xff] %v1125
        %2123 = vst [vmem:[%s307 + $0x70] sm:$0xff] %v1129
        %2124 = vst [vmem:[%s307 + $0x78] sm:$0xff] %v1131
        %2125 = vst [vmem:[%s307 + $0x80] sm:$0xff] %v1135
        %2126 = vst [vmem:[%s307 + $0x88] sm:$0xff] %v1137
        %2127 = vst [vmem:[%s307 + $0x90] sm:$0xff] %v1141
        %2128 = vst [vmem:[%s307 + $0x98] sm:$0xff] %v1143
        %2129 = vst [vmem:[%s307 + $0xa0] sm:$0xff] %v1147
        %2130 = vst [vmem:[%s307 + $0xa8] sm:$0xff] %v1149
        %2131 = vst [vmem:[%s307 + $0xb0] sm:$0xff] %v1153
        %2132 = vst [vmem:[%s307 + $0xb8] sm:$0xff] %v1155
        %2133 = vst [vmem:[%s307 + $0xc0] sm:$0xff] %v1159
        %2134 = vst [vmem:[%s307 + $0xc8] sm:$0xff] %v1161
        %2135 = vst [vmem:[%s307 + $0xd0] sm:$0xff] %v1165
        %2136 = vst [vmem:[%s307 + $0xd8] sm:$0xff] %v1167
        %2137 = vst [vmem:[%s307 + $0xe0] sm:$0xff] %v1171
        %2138 = vst [vmem:[%s307 + $0xe8] sm:$0xff] %v1173
        %2139 = vst [vmem:[%s307 + $0xf0] sm:$0xff] %v1177
        %2140 = vst [vmem:[%s307 + $0xf8] sm:$0xff] %v1179
        %s2141 = sand.u32 %s131, 1
        %s2142 = scalar_lea.sflag [#allocation4], %s2141
        %s2143 = sand.u32 %s131, 1
        %s2144 = smul.addr %s2143, 128
        %s2145 = scalar_lea.vmem [#allocation8], %s2144
        %s2146 = sand.u32 %s157, 1
        %s2147 = scalar_lea.sflag [#allocation10], %s2146
        %s2148 = sand.u32 %s157, 1
        %s2149 = smul.addr %s2148, 256
        %s2150 = scalar_lea.vmem [#allocation9], %s2149
        // Predicated region
        $region49: #{tpu_custom_call.1} parent=35 // pred_check
          %p2151 = pneg %p141
        $region50: #{tpu_custom_call.1} parent=35 // pred_check_branch
          %2153 = sbr.rel (%p2151) target = $region52
        $region51: #{tpu_custom_call.1} parent=35 // pred_region
          %s2154 = smul.u32 16, %s29
          %s2156 = ssub.s32 2048, 2048
          %2157 = vsyncadd %s2142, %s2156
          %s2158 = smul.addr %s2154, 128
          %s2159 = scalar_lea.hbm %s4, %s2158
          %s2160 = sshll.u32 %s2145, 4
          %s2161 = int_to_ptr.vmem [resolvable:$true] %s2160
          %2166 = dma.vmem_to_hbm [thread:$0]  %s2161, 2048, %s2159, %s2142, 128, 128, 8
        $region52: #{tpu_custom_call.1} parent=35 // pred_fallthru
          _
        // Predicated region
        $region53: #{tpu_custom_call.1} parent=35 // pred_check
          %p2167 = pneg %p167
        $region54: #{tpu_custom_call.1} parent=35 // pred_check_branch
          %2169 = sbr.rel (%p2167) target = $region56
        $region55: #{tpu_custom_call.1} parent=35 // pred_region
          %s2170 = smul.u32 16, %s29
          %s2172 = ssub.s32 4096, 4096
          %2173 = vsyncadd %s2147, %s2172
          %s2174 = smul.addr %s2170, 2
          %s2175 = smul.addr %s2174, 128
          %s2176 = scalar_lea.hbm %s5, %s2175
          %s2177 = sshll.u32 %s2150, 4
          %s2178 = int_to_ptr.vmem [resolvable:$true] %s2177
          %2183 = dma.vmem_to_hbm [thread:$0]  %s2178, 4096, %s2176, %s2147, 256, 256, 16
        $region56: #{tpu_custom_call.1} parent=35 // pred_fallthru
          _
      $region36: #{tpu_custom_call.1} parent=5 // pred_fallthru
        _
      %p2184 = scmp.le.s32.totalorder 2, %s24
      // Predicated region
      $region57: #{tpu_custom_call.1} parent=5 // pred_check
        %p2185 = pneg %p2184
      $region58: #{tpu_custom_call.1} parent=5 // pred_check_branch
        %2187 = sbr.rel (%p2185) target = $region60
      $region59: #{tpu_custom_call.1} parent=5 // pred_region
        %s2188 = ssub.s32 %s24, 2
        // Predicated region
        $region61: #{tpu_custom_call.1} parent=59 // pred_check
          %p2189 = pneg %p147
        $region62: #{tpu_custom_call.1} parent=59 // pred_check_branch
          %2191 = sbr.rel (%p2189) target = $region64
        $region63: #{tpu_custom_call.1} parent=59 // pred_region
          %s2192 = sand.u32 %s132, 1
          %s2193 = scalar_lea.sflag [#allocation4], %s2192
          %s2194 = sand.u32 %s132, 1
          %s2195 = smul.addr %s2194, 128
          %s2196 = scalar_lea.vmem [#allocation8], %s2195
          %2197 = dma.done %s2193, 2048
        $region64: #{tpu_custom_call.1} parent=59 // pred_fallthru
          _
        // Predicated region
        $region65: #{tpu_custom_call.1} parent=59 // pred_check
          %p2198 = pneg %p173
        $region66: #{tpu_custom_call.1} parent=59 // pred_check_branch
          %2200 = sbr.rel (%p2198) target = $region68
        $region67: #{tpu_custom_call.1} parent=59 // pred_region
          %s2201 = sand.u32 %s158, 1
          %s2202 = scalar_lea.sflag [#allocation10], %s2201
          %s2203 = sand.u32 %s158, 1
          %s2204 = smul.addr %s2203, 256
          %s2205 = scalar_lea.vmem [#allocation9], %s2204
          %2206 = dma.done %s2202, 4096
        $region68: #{tpu_custom_call.1} parent=59 // pred_fallthru
          _
      $region60: #{tpu_custom_call.1} parent=5 // pred_fallthru
        _
    $region6: #{tpu_custom_call.1} parent=1 // loop_footer
      %s28 = sadd.s32 1, %s24
    $region7: #{tpu_custom_call.1} parent=1 // loop_footer_branch
      %23 = sbr.rel target = $region3
    $region8: #{tpu_custom_call.1} parent=1 // loop_exit
      _
    %2207 = vsyncpa [#allocation3], 1
    %s2208 = scalar_lea.sflag [#allocation3], 1
    %2209 = vsyncpa %s2208, 1
    %2210 = vsyncpa [#allocation6], 1
    %s2211 = scalar_lea.sflag [#allocation6], 1
    %2212 = vsyncpa %s2211, 1
    %2213 = vsyncpa [#allocation4], 1
    %s2214 = scalar_lea.sflag [#allocation4], 1
    %2215 = vsyncpa %s2214, 1
    %2216 = vsyncpa [#allocation10], 1
    %s2217 = scalar_lea.sflag [#allocation10], 1
    %2218 = vsyncpa %s2217, 1

</llo_original>
